<compile_context>
chip_gen: v5e
topology: v5e:2x2
jax: 0.10.0
libtpu: 0.0.40
codegen_flags: <defaults>
</compile_context>

<pallas_src>
import functools

import jax
import jax.numpy as jnp
from jax import lax
from jax.experimental import pallas as pl
from jax.experimental.pallas import tpu as pltpu

_VMEM_LIMIT = 48 * 1024 * 1024   # fits v5e/v6e (128 MiB) and v7x (64 MiB) VMEM


# --------------------------------------------------------------------------
# 1) 3-D "same" convolution (+ optional fused PReLU)
# --------------------------------------------------------------------------
def _conv3d_kernel(*refs, K, H, Wp, apply_prelu):
    """One output depth slice of a K x K x K 'same' conv.

    refs = (x_0, ..., x_{K-1}, w, b, alpha, out)
      x_kd  : (1, 1, Ci, L)       padded plane at depth d+kd, (H,W) flattened
      w     : (K^3, Co, Ci)       w[(kd*K+kh)*K+kw] = W_torch[:, :, kd, kh, kw]
      b     : (Co, 1)             bias column (zeros if bias=False)
      alpha : (1, 1)              PReLU slope (unused if apply_prelu=False)
      out   : (1, 1, Co, H*Wp)    width-padded output (cols >= W stripped later)
    """
    x_refs = refs[:K]
    w_ref, b_ref, alpha_ref, o_ref = refs[K:]
    Co = o_ref.shape[2]
    HWp = H * Wp

    acc = jnp.zeros((Co, HWp), jnp.float32)
    for kd in range(K):
        xs = x_refs[kd][0, 0, :, :].astype(jnp.float32)          # (Ci, L)
        for kh in range(K):
            for kw in range(K):
                off = kh * Wp + kw                               # static
                win = xs[:, off:off + HWp]                       # (Ci, H*Wp)
                wsl = w_ref[(kd * K + kh) * K + kw]              # (Co, Ci)
                acc = acc + jnp.dot(wsl, win,
                                    preferred_element_type=jnp.float32)
    acc = acc + b_ref[...]                                       # (Co,1) bcast
    if apply_prelu:
        a = alpha_ref[...]                                       # (1, 1)
        acc = jnp.where(acc >= 0, acc, acc * a)
    o_ref[...] = acc.reshape(1, 1, Co, HWp).astype(o_ref.dtype)


def _conv3d_same(x_int, w, b, alpha, *, apply_prelu):
    """3-D 'same' conv on internal layout (B, D, C, H, W) -> (B, D, Co, H, W)."""
    B, D, Ci, H, W = x_int.shape
    Co, _, K, _, _ = w.shape
    P = K // 2
    Hp, Wp = H + 2 * P, W + 2 * P
    HWp = H * Wp
    # Pad D/H/W; one extra zero row below H so that every flattened window
    # read (offset kh*Wp+kw, length H*Wp) stays in bounds.
    x_pad = jnp.pad(x_int, ((0, 0), (P, P), (0, 0), (P, P + 1), (P, P)))
    L = (Hp + 1) * Wp
    x_flat = x_pad.reshape(B, D + 2 * P, Ci, L)

    w_r = jnp.transpose(w, (2, 3, 4, 0, 1)).reshape(K * K * K, Co, Ci)
    w_r = w_r.astype(jnp.float32)
    b_col = (jnp.zeros((Co,), jnp.float32) if b is None
             else b.astype(jnp.float32)).reshape(Co, 1)
    a_mat = (jnp.zeros((1,), jnp.float32) if alpha is None
             else jnp.asarray(alpha, jnp.float32).reshape(-1)[:1]).reshape(1, 1)

    # K overlapping depth views of the same padded array (offset index_maps).
    x_specs = [
        pl.BlockSpec((1, 1, Ci, L),
                     (lambda bb, dd, kd=kd: (bb, dd + kd, 0, 0)))
        for kd in range(K)
    ]
    flops = 2 * B * D * HWp * Co * Ci * K ** 3
    bytes_accessed = 4 * (K * x_flat.size + w_r.size + B * D * Co * HWp)

    out = pl.pallas_call(
        functools.partial(_conv3d_kernel, K=K, H=H, Wp=Wp,
                          apply_prelu=apply_prelu),
        out_shape=jax.ShapeDtypeStruct((B, D, Co, HWp), x_int.dtype),
        grid=(B, D),
        in_specs=x_specs + [
            pl.BlockSpec((K * K * K, Co, Ci), lambda bb, dd: (0, 0, 0)),
            pl.BlockSpec((Co, 1), lambda bb, dd: (0, 0)),
            pl.BlockSpec((1, 1), lambda bb, dd: (0, 0)),
        ],
        out_specs=pl.BlockSpec((1, 1, Co, HWp), lambda bb, dd: (bb, dd, 0, 0)),
        compiler_params=pltpu.CompilerParams(
            dimension_semantics=("parallel", "parallel"),
            vmem_limit_bytes=_VMEM_LIMIT),
        cost_estimate=pl.CostEstimate(flops=flops, transcendentals=0,
                                      bytes_accessed=bytes_accessed),
    )(*([x_flat] * K), w_r, b_col, a_mat)

    # strip padded-width columns: (B, D, Co, H*Wp) -> (B, D, Co, H, W)
    return out.reshape(B, D, Co, H, Wp)[..., :W]


# --------------------------------------------------------------------------
# 2) Channel-attention gate:  sigmoid(Wu @ relu(Wd @ mean_spatial(h2)))
# --------------------------------------------------------------------------
def _ca_gate_kernel(h2_ref, wd_ref, bd_ref, wu_ref, bu_ref, o_ref, acc_ref,
                    *, inv_n):
    d = pl.program_id(1)

    @pl.when(d == 0)
    def _init():
        acc_ref[...] = jnp.zeros_like(acc_ref)

    # partial spatial sum of this depth slice (channels stay on sublanes)
    s = jnp.sum(h2_ref[...].astype(jnp.float32), axis=-1, keepdims=True)
    acc_ref[...] += s.reshape(acc_ref.shape)                      # (C, 1)

    @pl.when(d == pl.num_programs(1) - 1)
    def _finish():
        mean_c = acc_ref[...] * inv_n                             # (C, 1)
        y = jnp.dot(wd_ref[...], mean_c,
                    preferred_element_type=jnp.float32) + bd_ref[...]
        y = jnp.maximum(y, 0.0)                                   # (Cr, 1)
        y = jnp.dot(wu_ref[...], y,
                    preferred_element_type=jnp.float32) + bu_ref[...]
        gate = 1.0 / (1.0 + jnp.exp(-y))                          # (C, 1)
        o_ref[...] = gate.reshape(o_ref.shape).astype(o_ref.dtype)


def _ca_gate(h2_int, wd, bd, wu, bu):
    B, D, C, H, W = h2_int.shape
    HW = H * W
    Cr = wd.shape[0]
    h2f = h2_int.reshape(B, D, C, HW)
    wd2 = wd.reshape(Cr, C).astype(jnp.float32)
    wu2 = wu.reshape(C, Cr).astype(jnp.float32)
    bd_col = (jnp.zeros((Cr,), jnp.float32) if bd is None
              else bd.astype(jnp.float32)).reshape(Cr, 1)
    bu_col = (jnp.zeros((C,), jnp.float32) if bu is None
              else bu.astype(jnp.float32)).reshape(C, 1)

    return pl.pallas_call(
        functools.partial(_ca_gate_kernel, inv_n=1.0 / float(D * HW)),
        out_shape=jax.ShapeDtypeStruct((B, C, 1), jnp.float32),
        grid=(B, D),
        in_specs=[
            pl.BlockSpec((1, 1, C, HW), lambda bb, dd: (bb, dd, 0, 0)),
            pl.BlockSpec((Cr, C), lambda bb, dd: (0, 0)),
            pl.BlockSpec((Cr, 1), lambda bb, dd: (0, 0)),
            pl.BlockSpec((C, Cr), lambda bb, dd: (0, 0)),
            pl.BlockSpec((C, 1), lambda bb, dd: (0, 0)),
        ],
        out_specs=pl.BlockSpec((1, C, 1), lambda bb, dd: (bb, 0, 0)),
        scratch_shapes=[pltpu.VMEM((C, 1), jnp.float32)],
        compiler_params=pltpu.CompilerParams(
            dimension_semantics=("parallel", "arbitrary"),
            vmem_limit_bytes=_VMEM_LIMIT),
    )(h2f, wd2, bd_col, wu2, bu_col)


# --------------------------------------------------------------------------
# 3) out = h2 * gate + x   (FiLM-style scale + residual, lane-dense tiles)
# --------------------------------------------------------------------------
def _scale_res_kernel(h2_ref, x_ref, gate_ref, o_ref):
    g = gate_ref[...]                                             # (1, C, 1)
    val = h2_ref[...].astype(jnp.float32) * g + x_ref[...].astype(jnp.float32)
    o_ref[...] = val.astype(o_ref.dtype)


def _pick_tile(hw, max_tile=4096):
    """Largest lane tile (multiple of 128) that divides hw; else the full hw."""
    if hw <= max_tile or hw % 128 != 0:
        return hw
    for ts in range(max_tile, 127, -128):
        if hw % ts == 0:
            return ts
    return hw


def _scale_residual(h2_int, x_int, gate):
    B, D, C, H, W = h2_int.shape
    HW = H * W
    h2f = h2_int.reshape(B, D, C, HW)
    xf = x_int.reshape(B, D, C, HW)
    TS = _pick_tile(HW)
    NS = HW // TS
    itemsize = jnp.dtype(x_int.dtype).itemsize

    out = pl.pallas_call(
        _scale_res_kernel,
        out_shape=jax.ShapeDtypeStruct((B, D, C, HW), x_int.dtype),
        grid=(B, D, NS),
        in_specs=[
            pl.BlockSpec((1, 1, C, TS), lambda bb, dd, ss: (bb, dd, 0, ss)),
            pl.BlockSpec((1, 1, C, TS), lambda bb, dd, ss: (bb, dd, 0, ss)),
            pl.BlockSpec((1, C, 1), lambda bb, dd, ss: (bb, 0, 0)),
        ],
        out_specs=pl.BlockSpec((1, 1, C, TS),
                               lambda bb, dd, ss: (bb, dd, 0, ss)),
        compiler_params=pltpu.CompilerParams(
            dimension_semantics=("parallel", "parallel", "parallel"),
            vmem_limit_bytes=_VMEM_LIMIT),
        cost_estimate=pl.CostEstimate(
            flops=2 * B * D * C * HW, transcendentals=0,
            bytes_accessed=3 * B * D * C * HW * itemsize),
    )(h2f, xf, gate)
    return out.reshape(B, D, C, H, W)


# --------------------------------------------------------------------------
# CAB forward
# --------------------------------------------------------------------------
def cab_forward(x, w1, b1, alpha, w2, b2, wd, bd, wu, bu):
    """Pallas implementation of CAB.forward (act = nn.PReLU, single slope)."""
    # internal layout (B, D, C, H, W): channels on sublanes, plane on lanes.
    x_int = jnp.transpose(x, (0, 2, 1, 3, 4))
    h1 = _conv3d_same(x_int, w1, b1, alpha, apply_prelu=True)
    h2 = _conv3d_same(h1, w2, b2, None, apply_prelu=False)
    gate = _ca_gate(h2, wd, bd, wu, bu)
    out_int = _scale_residual(h2, x_int, gate)
    return jnp.transpose(out_int, (0, 2, 1, 3, 4))


# --------------------------------------------------------------------------
# Pure-JAX reference matching the PyTorch forward
# --------------------------------------------------------------------------
def cab_ref(x, w1, b1, alpha, w2, b2, wd, bd, wu, bu):
    P = w1.shape[2] // 2
    dn = ("NCDHW", "OIDHW", "NCDHW")
    hp = lax.Precision.HIGHEST
    h1 = lax.conv_general_dilated(x, w1, (1, 1, 1), [(P, P)] * 3,
                                  dimension_numbers=dn, precision=hp)
    if b1 is not None:
        h1 = h1 + b1.reshape(1, -1, 1, 1, 1)
    h1 = jnp.where(h1 >= 0, h1, alpha[0] * h1)                    # PReLU
    h2 = lax.conv_general_dilated(h1, w2, (1, 1, 1), [(P, P)] * 3,
                                  dimension_numbers=dn, precision=hp)
    if b2 is not None:
        h2 = h2 + b2.reshape(1, -1, 1, 1, 1)
    s = jnp.mean(h2, axis=(2, 3, 4))                              # (B, C)
    y = s @ wd.reshape(wd.shape[0], -1).T
    if bd is not None:
        y = y + bd
    y = jnp.maximum(y, 0.0)
    y = y @ wu.reshape(wu.shape[0], -1).T
    if bu is not None:
        y = y + bu
    g = jax.nn.sigmoid(y)
    return h2 * g[:, :, None, None, None] + x


if __name__ == "__main__":
    key = jax.random.PRNGKey(0)
    ks = jax.random.split(key, 5)

    # Small CAB config: n_feat=4, kernel_size=3, reduction=2, bias=False,
    # act=nn.PReLU(); input (B, C, D, H, W) = (2, 4, 4, 8, 8).
    B, C, D, H, W = 2, 4, 4, 8, 8
    K, red = 3, 2

    def bf16_exact(a):
        # round test data to bf16-representable values so any reduced-precision
        # MXU input pass is bit-compatible with the f32 reference
        return a.astype(jnp.bfloat16).astype(jnp.float32)

    x = bf16_exact(jax.random.normal(ks[0], (B, C, D, H, W), jnp.float32))
    w1 = bf16_exact(0.1 * jax.random.normal(ks[1], (C, C, K, K, K), jnp.float32))
    w2 = bf16_exact(0.1 * jax.random.normal(ks[2], (C, C, K, K, K), jnp.float32))
    wd = bf16_exact(0.5 * jax.random.normal(ks[3], (C // red, C, 1, 1, 1),
                                            jnp.float32))
    wu = bf16_exact(0.5 * jax.random.normal(ks[4], (C, C // red, 1, 1, 1),
                                            jnp.float32))
    alpha = jnp.full((1,), 0.25, jnp.float32)   # nn.PReLU() default init
    b1 = b2 = bd = bu = None                    # bias=False

    out = cab_forward(x, w1, b1, alpha, w2, b2, wd, bd, wu, bu)
    out = jax.block_until_ready(out)

    ref = cab_ref(x, w1, b1, alpha, w2, b2, wd, bd, wu, bu)
    assert out.shape == (B, C, D, H, W)
    err = float(jnp.max(jnp.abs(out - ref)))
    assert err < 1e-3, f"mismatch vs reference: max abs err = {err}"

    print("KERNEL_OK")
</pallas_src>

<mosaic_0001>
module attributes {stable_mosaic.version = 11 : i64} {
  func.func @_conv3d_kernel(%arg0: i32, %arg1: i32, %arg2: memref<1x1x4x110xf32, #tpu.memory_space<vmem>>, %arg3: memref<1x1x4x110xf32, #tpu.memory_space<vmem>>, %arg4: memref<1x1x4x110xf32, #tpu.memory_space<vmem>>, %arg5: memref<27x4x4xf32, #tpu.memory_space<vmem>>, %arg6: memref<4x1xf32, #tpu.memory_space<vmem>>, %arg7: memref<1x1xf32, #tpu.memory_space<vmem>>, %arg8: memref<1x1x4x80xf32, #tpu.memory_space<vmem>>) attributes {dimension_semantics = [#tpu.dimension_semantics<parallel>, #tpu.dimension_semantics<parallel>], iteration_bounds = array<i64: 2, 4>, scalar_prefetch = 0 : i64, scratch_operands = 0 : i64, tpu.core_type = #tpu.core_type<tc>, window_params = [{transform_indices = @transform_0, window_bounds = array<i64: 1, 1, 4, 110>}, {transform_indices = @transform_1, window_bounds = array<i64: 1, 1, 4, 110>}, {transform_indices = @transform_2, window_bounds = array<i64: 1, 1, 4, 110>}, {pipeline_mode = #tpu.pipeline_mode<synchronous>, transform_indices = @transform_3, window_bounds = array<i64: 27, 4, 4>}, {pipeline_mode = #tpu.pipeline_mode<synchronous>, transform_indices = @transform_4, window_bounds = array<i64: 4, 1>}, {pipeline_mode = #tpu.pipeline_mode<synchronous>, transform_indices = @transform_5, window_bounds = array<i64: 1, 1>}, {transform_indices = @transform_6, window_bounds = array<i64: 1, 1, 4, 80>}]} {
    %cst = arith.constant 0.000000e+00 : f32
    %0 = vector.broadcast %cst : f32 to vector<4x80xf32>
    %c0 = arith.constant 0 : index
    %c0_0 = arith.constant 0 : index
    %c0_1 = arith.constant 0 : index
    %c0_2 = arith.constant 0 : index
    %1 = vector.load %arg2[%c0, %c0_0, %c0_1, %c0_2] : memref<1x1x4x110xf32, #tpu.memory_space<vmem>>, vector<1x1x4x110xf32>
    %2 = vector.shape_cast %1 : vector<1x1x4x110xf32> to vector<4x110xf32>
    %3 = vector.extract_strided_slice %2 {offsets = [0, 0], sizes = [4, 80], strides = [1, 1]} : vector<4x110xf32> to vector<4x80xf32>
    %c0_3 = arith.constant 0 : index
    %c0_4 = arith.constant 0 : index
    %c0_5 = arith.constant 0 : index
    %4 = vector.load %arg5[%c0_3, %c0_4, %c0_5] : memref<27x4x4xf32, #tpu.memory_space<vmem>>, vector<1x4x4xf32>
    %5 = vector.shape_cast %4 : vector<1x4x4xf32> to vector<4x4xf32>
    %cst_6 = arith.constant dense<0.000000e+00> : vector<4x80xf32>
    %6 = tpu.matmul %5, %3, %cst_6 {dimension_numbers = #tpu.dot_dimension_numbers<[1], [0], [0], [1], [0, 0, 1, 1], [], []>} : vector<4x4xf32>, vector<4x80xf32>, vector<4x80xf32> -> vector<4x80xf32>
    %7 = arith.addf %0, %6 : vector<4x80xf32>
    %8 = vector.extract_strided_slice %2 {offsets = [0, 1], sizes = [4, 80], strides = [1, 1]} : vector<4x110xf32> to vector<4x80xf32>
    %c1 = arith.constant 1 : index
    %c0_7 = arith.constant 0 : index
    %c0_8 = arith.constant 0 : index
    %9 = vector.load %arg5[%c1, %c0_7, %c0_8] : memref<27x4x4xf32, #tpu.memory_space<vmem>>, vector<1x4x4xf32>
    %10 = vector.shape_cast %9 : vector<1x4x4xf32> to vector<4x4xf32>
    %cst_9 = arith.constant dense<0.000000e+00> : vector<4x80xf32>
    %11 = tpu.matmul %10, %8, %cst_9 {dimension_numbers = #tpu.dot_dimension_numbers<[1], [0], [0], [1], [0, 0, 1, 1], [], []>} : vector<4x4xf32>, vector<4x80xf32>, vector<4x80xf32> -> vector<4x80xf32>
    %12 = arith.addf %7, %11 : vector<4x80xf32>
    %13 = vector.extract_strided_slice %2 {offsets = [0, 2], sizes = [4, 80], strides = [1, 1]} : vector<4x110xf32> to vector<4x80xf32>
    %c2 = arith.constant 2 : index
    %c0_10 = arith.constant 0 : index
    %c0_11 = arith.constant 0 : index
    %14 = vector.load %arg5[%c2, %c0_10, %c0_11] : memref<27x4x4xf32, #tpu.memory_space<vmem>>, vector<1x4x4xf32>
    %15 = vector.shape_cast %14 : vector<1x4x4xf32> to vector<4x4xf32>
    %cst_12 = arith.constant dense<0.000000e+00> : vector<4x80xf32>
    %16 = tpu.matmul %15, %13, %cst_12 {dimension_numbers = #tpu.dot_dimension_numbers<[1], [0], [0], [1], [0, 0, 1, 1], [], []>} : vector<4x4xf32>, vector<4x80xf32>, vector<4x80xf32> -> vector<4x80xf32>
    %17 = arith.addf %12, %16 : vector<4x80xf32>
    %18 = vector.extract_strided_slice %2 {offsets = [0, 10], sizes = [4, 80], strides = [1, 1]} : vector<4x110xf32> to vector<4x80xf32>
    %c3 = arith.constant 3 : index
    %c0_13 = arith.constant 0 : index
    %c0_14 = arith.constant 0 : index
    %19 = vector.load %arg5[%c3, %c0_13, %c0_14] : memref<27x4x4xf32, #tpu.memory_space<vmem>>, vector<1x4x4xf32>
    %20 = vector.shape_cast %19 : vector<1x4x4xf32> to vector<4x4xf32>
    %cst_15 = arith.constant dense<0.000000e+00> : vector<4x80xf32>
    %21 = tpu.matmul %20, %18, %cst_15 {dimension_numbers = #tpu.dot_dimension_numbers<[1], [0], [0], [1], [0, 0, 1, 1], [], []>} : vector<4x4xf32>, vector<4x80xf32>, vector<4x80xf32> -> vector<4x80xf32>
    %22 = arith.addf %17, %21 : vector<4x80xf32>
    %23 = vector.extract_strided_slice %2 {offsets = [0, 11], sizes = [4, 80], strides = [1, 1]} : vector<4x110xf32> to vector<4x80xf32>
    %c4 = arith.constant 4 : index
    %c0_16 = arith.constant 0 : index
    %c0_17 = arith.constant 0 : index
    %24 = vector.load %arg5[%c4, %c0_16, %c0_17] : memref<27x4x4xf32, #tpu.memory_space<vmem>>, vector<1x4x4xf32>
    %25 = vector.shape_cast %24 : vector<1x4x4xf32> to vector<4x4xf32>
    %cst_18 = arith.constant dense<0.000000e+00> : vector<4x80xf32>
    %26 = tpu.matmul %25, %23, %cst_18 {dimension_numbers = #tpu.dot_dimension_numbers<[1], [0], [0], [1], [0, 0, 1, 1], [], []>} : vector<4x4xf32>, vector<4x80xf32>, vector<4x80xf32> -> vector<4x80xf32>
    %27 = arith.addf %22, %26 : vector<4x80xf32>
    %28 = vector.extract_strided_slice %2 {offsets = [0, 12], sizes = [4, 80], strides = [1, 1]} : vector<4x110xf32> to vector<4x80xf32>
    %c5 = arith.constant 5 : index
    %c0_19 = arith.constant 0 : index
    %c0_20 = arith.constant 0 : index
    %29 = vector.load %arg5[%c5, %c0_19, %c0_20] : memref<27x4x4xf32, #tpu.memory_space<vmem>>, vector<1x4x4xf32>
    %30 = vector.shape_cast %29 : vector<1x4x4xf32> to vector<4x4xf32>
    %cst_21 = arith.constant dense<0.000000e+00> : vector<4x80xf32>
    %31 = tpu.matmul %30, %28, %cst_21 {dimension_numbers = #tpu.dot_dimension_numbers<[1], [0], [0], [1], [0, 0, 1, 1], [], []>} : vector<4x4xf32>, vector<4x80xf32>, vector<4x80xf32> -> vector<4x80xf32>
    %32 = arith.addf %27, %31 : vector<4x80xf32>
    %33 = vector.extract_strided_slice %2 {offsets = [0, 20], sizes = [4, 80], strides = [1, 1]} : vector<4x110xf32> to vector<4x80xf32>
    %c6 = arith.constant 6 : index
    %c0_22 = arith.constant 0 : index
    %c0_23 = arith.constant 0 : index
    %34 = vector.load %arg5[%c6, %c0_22, %c0_23] : memref<27x4x4xf32, #tpu.memory_space<vmem>>, vector<1x4x4xf32>
    %35 = vector.shape_cast %34 : vector<1x4x4xf32> to vector<4x4xf32>
    %cst_24 = arith.constant dense<0.000000e+00> : vector<4x80xf32>
    %36 = tpu.matmul %35, %33, %cst_24 {dimension_numbers = #tpu.dot_dimension_numbers<[1], [0], [0], [1], [0, 0, 1, 1], [], []>} : vector<4x4xf32>, vector<4x80xf32>, vector<4x80xf32> -> vector<4x80xf32>
    %37 = arith.addf %32, %36 : vector<4x80xf32>
    %38 = vector.extract_strided_slice %2 {offsets = [0, 21], sizes = [4, 80], strides = [1, 1]} : vector<4x110xf32> to vector<4x80xf32>
    %c7 = arith.constant 7 : index
    %c0_25 = arith.constant 0 : index
    %c0_26 = arith.constant 0 : index
    %39 = vector.load %arg5[%c7, %c0_25, %c0_26] : memref<27x4x4xf32, #tpu.memory_space<vmem>>, vector<1x4x4xf32>
    %40 = vector.shape_cast %39 : vector<1x4x4xf32> to vector<4x4xf32>
    %cst_27 = arith.constant dense<0.000000e+00> : vector<4x80xf32>
    %41 = tpu.matmul %40, %38, %cst_27 {dimension_numbers = #tpu.dot_dimension_numbers<[1], [0], [0], [1], [0, 0, 1, 1], [], []>} : vector<4x4xf32>, vector<4x80xf32>, vector<4x80xf32> -> vector<4x80xf32>
    %42 = arith.addf %37, %41 : vector<4x80xf32>
    %43 = vector.extract_strided_slice %2 {offsets = [0, 22], sizes = [4, 80], strides = [1, 1]} : vector<4x110xf32> to vector<4x80xf32>
    %c8 = arith.constant 8 : index
    %c0_28 = arith.constant 0 : index
    %c0_29 = arith.constant 0 : index
    %44 = vector.load %arg5[%c8, %c0_28, %c0_29] : memref<27x4x4xf32, #tpu.memory_space<vmem>>, vector<1x4x4xf32>
    %45 = vector.shape_cast %44 : vector<1x4x4xf32> to vector<4x4xf32>
    %cst_30 = arith.constant dense<0.000000e+00> : vector<4x80xf32>
    %46 = tpu.matmul %45, %43, %cst_30 {dimension_numbers = #tpu.dot_dimension_numbers<[1], [0], [0], [1], [0, 0, 1, 1], [], []>} : vector<4x4xf32>, vector<4x80xf32>, vector<4x80xf32> -> vector<4x80xf32>
    %47 = arith.addf %42, %46 : vector<4x80xf32>
    %c0_31 = arith.constant 0 : index
    %c0_32 = arith.constant 0 : index
    %c0_33 = arith.constant 0 : index
    %c0_34 = arith.constant 0 : index
    %48 = vector.load %arg3[%c0_31, %c0_32, %c0_33, %c0_34] : memref<1x1x4x110xf32, #tpu.memory_space<vmem>>, vector<1x1x4x110xf32>
    %49 = vector.shape_cast %48 : vector<1x1x4x110xf32> to vector<4x110xf32>
    %50 = vector.extract_strided_slice %49 {offsets = [0, 0], sizes = [4, 80], strides = [1, 1]} : vector<4x110xf32> to vector<4x80xf32>
    %c9 = arith.constant 9 : index
    %c0_35 = arith.constant 0 : index
    %c0_36 = arith.constant 0 : index
    %51 = vector.load %arg5[%c9, %c0_35, %c0_36] : memref<27x4x4xf32, #tpu.memory_space<vmem>>, vector<1x4x4xf32>
    %52 = vector.shape_cast %51 : vector<1x4x4xf32> to vector<4x4xf32>
    %cst_37 = arith.constant dense<0.000000e+00> : vector<4x80xf32>
    %53 = tpu.matmul %52, %50, %cst_37 {dimension_numbers = #tpu.dot_dimension_numbers<[1], [0], [0], [1], [0, 0, 1, 1], [], []>} : vector<4x4xf32>, vector<4x80xf32>, vector<4x80xf32> -> vector<4x80xf32>
    %54 = arith.addf %47, %53 : vector<4x80xf32>
    %55 = vector.extract_strided_slice %49 {offsets = [0, 1], sizes = [4, 80], strides = [1, 1]} : vector<4x110xf32> to vector<4x80xf32>
    %c10 = arith.constant 10 : index
    %c0_38 = arith.constant 0 : index
    %c0_39 = arith.constant 0 : index
    %56 = vector.load %arg5[%c10, %c0_38, %c0_39] : memref<27x4x4xf32, #tpu.memory_space<vmem>>, vector<1x4x4xf32>
    %57 = vector.shape_cast %56 : vector<1x4x4xf32> to vector<4x4xf32>
    %cst_40 = arith.constant dense<0.000000e+00> : vector<4x80xf32>
    %58 = tpu.matmul %57, %55, %cst_40 {dimension_numbers = #tpu.dot_dimension_numbers<[1], [0], [0], [1], [0, 0, 1, 1], [], []>} : vector<4x4xf32>, vector<4x80xf32>, vector<4x80xf32> -> vector<4x80xf32>
    %59 = arith.addf %54, %58 : vector<4x80xf32>
    %60 = vector.extract_strided_slice %49 {offsets = [0, 2], sizes = [4, 80], strides = [1, 1]} : vector<4x110xf32> to vector<4x80xf32>
    %c11 = arith.constant 11 : index
    %c0_41 = arith.constant 0 : index
    %c0_42 = arith.constant 0 : index
    %61 = vector.load %arg5[%c11, %c0_41, %c0_42] : memref<27x4x4xf32, #tpu.memory_space<vmem>>, vector<1x4x4xf32>
    %62 = vector.shape_cast %61 : vector<1x4x4xf32> to vector<4x4xf32>
    %cst_43 = arith.constant dense<0.000000e+00> : vector<4x80xf32>
    %63 = tpu.matmul %62, %60, %cst_43 {dimension_numbers = #tpu.dot_dimension_numbers<[1], [0], [0], [1], [0, 0, 1, 1], [], []>} : vector<4x4xf32>, vector<4x80xf32>, vector<4x80xf32> -> vector<4x80xf32>
    %64 = arith.addf %59, %63 : vector<4x80xf32>
    %65 = vector.extract_strided_slice %49 {offsets = [0, 10], sizes = [4, 80], strides = [1, 1]} : vector<4x110xf32> to vector<4x80xf32>
    %c12 = arith.constant 12 : index
    %c0_44 = arith.constant 0 : index
    %c0_45 = arith.constant 0 : index
    %66 = vector.load %arg5[%c12, %c0_44, %c0_45] : memref<27x4x4xf32, #tpu.memory_space<vmem>>, vector<1x4x4xf32>
    %67 = vector.shape_cast %66 : vector<1x4x4xf32> to vector<4x4xf32>
    %cst_46 = arith.constant dense<0.000000e+00> : vector<4x80xf32>
    %68 = tpu.matmul %67, %65, %cst_46 {dimension_numbers = #tpu.dot_dimension_numbers<[1], [0], [0], [1], [0, 0, 1, 1], [], []>} : vector<4x4xf32>, vector<4x80xf32>, vector<4x80xf32> -> vector<4x80xf32>
    %69 = arith.addf %64, %68 : vector<4x80xf32>
    %70 = vector.extract_strided_slice %49 {offsets = [0, 11], sizes = [4, 80], strides = [1, 1]} : vector<4x110xf32> to vector<4x80xf32>
    %c13 = arith.constant 13 : index
    %c0_47 = arith.constant 0 : index
    %c0_48 = arith.constant 0 : index
    %71 = vector.load %arg5[%c13, %c0_47, %c0_48] : memref<27x4x4xf32, #tpu.memory_space<vmem>>, vector<1x4x4xf32>
    %72 = vector.shape_cast %71 : vector<1x4x4xf32> to vector<4x4xf32>
    %cst_49 = arith.constant dense<0.000000e+00> : vector<4x80xf32>
    %73 = tpu.matmul %72, %70, %cst_49 {dimension_numbers = #tpu.dot_dimension_numbers<[1], [0], [0], [1], [0, 0, 1, 1], [], []>} : vector<4x4xf32>, vector<4x80xf32>, vector<4x80xf32> -> vector<4x80xf32>
    %74 = arith.addf %69, %73 : vector<4x80xf32>
    %75 = vector.extract_strided_slice %49 {offsets = [0, 12], sizes = [4, 80], strides = [1, 1]} : vector<4x110xf32> to vector<4x80xf32>
    %c14 = arith.constant 14 : index
    %c0_50 = arith.constant 0 : index
    %c0_51 = arith.constant 0 : index
    %76 = vector.load %arg5[%c14, %c0_50, %c0_51] : memref<27x4x4xf32, #tpu.memory_space<vmem>>, vector<1x4x4xf32>
    %77 = vector.shape_cast %76 : vector<1x4x4xf32> to vector<4x4xf32>
    %cst_52 = arith.constant dense<0.000000e+00> : vector<4x80xf32>
    %78 = tpu.matmul %77, %75, %cst_52 {dimension_numbers = #tpu.dot_dimension_numbers<[1], [0], [0], [1], [0, 0, 1, 1], [], []>} : vector<4x4xf32>, vector<4x80xf32>, vector<4x80xf32> -> vector<4x80xf32>
    %79 = arith.addf %74, %78 : vector<4x80xf32>
    %80 = vector.extract_strided_slice %49 {offsets = [0, 20], sizes = [4, 80], strides = [1, 1]} : vector<4x110xf32> to vector<4x80xf32>
    %c15 = arith.constant 15 : index
    %c0_53 = arith.constant 0 : index
    %c0_54 = arith.constant 0 : index
    %81 = vector.load %arg5[%c15, %c0_53, %c0_54] : memref<27x4x4xf32, #tpu.memory_space<vmem>>, vector<1x4x4xf32>
    %82 = vector.shape_cast %81 : vector<1x4x4xf32> to vector<4x4xf32>
    %cst_55 = arith.constant dense<0.000000e+00> : vector<4x80xf32>
    %83 = tpu.matmul %82, %80, %cst_55 {dimension_numbers = #tpu.dot_dimension_numbers<[1], [0], [0], [1], [0, 0, 1, 1], [], []>} : vector<4x4xf32>, vector<4x80xf32>, vector<4x80xf32> -> vector<4x80xf32>
    %84 = arith.addf %79, %83 : vector<4x80xf32>
    %85 = vector.extract_strided_slice %49 {offsets = [0, 21], sizes = [4, 80], strides = [1, 1]} : vector<4x110xf32> to vector<4x80xf32>
    %c16 = arith.constant 16 : index
    %c0_56 = arith.constant 0 : index
    %c0_57 = arith.constant 0 : index
    %86 = vector.load %arg5[%c16, %c0_56, %c0_57] : memref<27x4x4xf32, #tpu.memory_space<vmem>>, vector<1x4x4xf32>
    %87 = vector.shape_cast %86 : vector<1x4x4xf32> to vector<4x4xf32>
    %cst_58 = arith.constant dense<0.000000e+00> : vector<4x80xf32>
    %88 = tpu.matmul %87, %85, %cst_58 {dimension_numbers = #tpu.dot_dimension_numbers<[1], [0], [0], [1], [0, 0, 1, 1], [], []>} : vector<4x4xf32>, vector<4x80xf32>, vector<4x80xf32> -> vector<4x80xf32>
    %89 = arith.addf %84, %88 : vector<4x80xf32>
    %90 = vector.extract_strided_slice %49 {offsets = [0, 22], sizes = [4, 80], strides = [1, 1]} : vector<4x110xf32> to vector<4x80xf32>
    %c17 = arith.constant 17 : index
    %c0_59 = arith.constant 0 : index
    %c0_60 = arith.constant 0 : index
    %91 = vector.load %arg5[%c17, %c0_59, %c0_60] : memref<27x4x4xf32, #tpu.memory_space<vmem>>, vector<1x4x4xf32>
    %92 = vector.shape_cast %91 : vector<1x4x4xf32> to vector<4x4xf32>
    %cst_61 = arith.constant dense<0.000000e+00> : vector<4x80xf32>
    %93 = tpu.matmul %92, %90, %cst_61 {dimension_numbers = #tpu.dot_dimension_numbers<[1], [0], [0], [1], [0, 0, 1, 1], [], []>} : vector<4x4xf32>, vector<4x80xf32>, vector<4x80xf32> -> vector<4x80xf32>
    %94 = arith.addf %89, %93 : vector<4x80xf32>
    %c0_62 = arith.constant 0 : index
    %c0_63 = arith.constant 0 : index
    %c0_64 = arith.constant 0 : index
    %c0_65 = arith.constant 0 : index
    %95 = vector.load %arg4[%c0_62, %c0_63, %c0_64, %c0_65] : memref<1x1x4x110xf32, #tpu.memory_space<vmem>>, vector<1x1x4x110xf32>
    %96 = vector.shape_cast %95 : vector<1x1x4x110xf32> to vector<4x110xf32>
    %97 = vector.extract_strided_slice %96 {offsets = [0, 0], sizes = [4, 80], strides = [1, 1]} : vector<4x110xf32> to vector<4x80xf32>
    %c18 = arith.constant 18 : index
    %c0_66 = arith.constant 0 : index
    %c0_67 = arith.constant 0 : index
    %98 = vector.load %arg5[%c18, %c0_66, %c0_67] : memref<27x4x4xf32, #tpu.memory_space<vmem>>, vector<1x4x4xf32>
    %99 = vector.shape_cast %98 : vector<1x4x4xf32> to vector<4x4xf32>
    %cst_68 = arith.constant dense<0.000000e+00> : vector<4x80xf32>
    %100 = tpu.matmul %99, %97, %cst_68 {dimension_numbers = #tpu.dot_dimension_numbers<[1], [0], [0], [1], [0, 0, 1, 1], [], []>} : vector<4x4xf32>, vector<4x80xf32>, vector<4x80xf32> -> vector<4x80xf32>
    %101 = arith.addf %94, %100 : vector<4x80xf32>
    %102 = vector.extract_strided_slice %96 {offsets = [0, 1], sizes = [4, 80], strides = [1, 1]} : vector<4x110xf32> to vector<4x80xf32>
    %c19 = arith.constant 19 : index
    %c0_69 = arith.constant 0 : index
    %c0_70 = arith.constant 0 : index
    %103 = vector.load %arg5[%c19, %c0_69, %c0_70] : memref<27x4x4xf32, #tpu.memory_space<vmem>>, vector<1x4x4xf32>
    %104 = vector.shape_cast %103 : vector<1x4x4xf32> to vector<4x4xf32>
    %cst_71 = arith.constant dense<0.000000e+00> : vector<4x80xf32>
    %105 = tpu.matmul %104, %102, %cst_71 {dimension_numbers = #tpu.dot_dimension_numbers<[1], [0], [0], [1], [0, 0, 1, 1], [], []>} : vector<4x4xf32>, vector<4x80xf32>, vector<4x80xf32> -> vector<4x80xf32>
    %106 = arith.addf %101, %105 : vector<4x80xf32>
    %107 = vector.extract_strided_slice %96 {offsets = [0, 2], sizes = [4, 80], strides = [1, 1]} : vector<4x110xf32> to vector<4x80xf32>
    %c20 = arith.constant 20 : index
    %c0_72 = arith.constant 0 : index
    %c0_73 = arith.constant 0 : index
    %108 = vector.load %arg5[%c20, %c0_72, %c0_73] : memref<27x4x4xf32, #tpu.memory_space<vmem>>, vector<1x4x4xf32>
    %109 = vector.shape_cast %108 : vector<1x4x4xf32> to vector<4x4xf32>
    %cst_74 = arith.constant dense<0.000000e+00> : vector<4x80xf32>
    %110 = tpu.matmul %109, %107, %cst_74 {dimension_numbers = #tpu.dot_dimension_numbers<[1], [0], [0], [1], [0, 0, 1, 1], [], []>} : vector<4x4xf32>, vector<4x80xf32>, vector<4x80xf32> -> vector<4x80xf32>
    %111 = arith.addf %106, %110 : vector<4x80xf32>
    %112 = vector.extract_strided_slice %96 {offsets = [0, 10], sizes = [4, 80], strides = [1, 1]} : vector<4x110xf32> to vector<4x80xf32>
    %c21 = arith.constant 21 : index
    %c0_75 = arith.constant 0 : index
    %c0_76 = arith.constant 0 : index
    %113 = vector.load %arg5[%c21, %c0_75, %c0_76] : memref<27x4x4xf32, #tpu.memory_space<vmem>>, vector<1x4x4xf32>
    %114 = vector.shape_cast %113 : vector<1x4x4xf32> to vector<4x4xf32>
    %cst_77 = arith.constant dense<0.000000e+00> : vector<4x80xf32>
    %115 = tpu.matmul %114, %112, %cst_77 {dimension_numbers = #tpu.dot_dimension_numbers<[1], [0], [0], [1], [0, 0, 1, 1], [], []>} : vector<4x4xf32>, vector<4x80xf32>, vector<4x80xf32> -> vector<4x80xf32>
    %116 = arith.addf %111, %115 : vector<4x80xf32>
    %117 = vector.extract_strided_slice %96 {offsets = [0, 11], sizes = [4, 80], strides = [1, 1]} : vector<4x110xf32> to vector<4x80xf32>
    %c22 = arith.constant 22 : index
    %c0_78 = arith.constant 0 : index
    %c0_79 = arith.constant 0 : index
    %118 = vector.load %arg5[%c22, %c0_78, %c0_79] : memref<27x4x4xf32, #tpu.memory_space<vmem>>, vector<1x4x4xf32>
    %119 = vector.shape_cast %118 : vector<1x4x4xf32> to vector<4x4xf32>
    %cst_80 = arith.constant dense<0.000000e+00> : vector<4x80xf32>
    %120 = tpu.matmul %119, %117, %cst_80 {dimension_numbers = #tpu.dot_dimension_numbers<[1], [0], [0], [1], [0, 0, 1, 1], [], []>} : vector<4x4xf32>, vector<4x80xf32>, vector<4x80xf32> -> vector<4x80xf32>
    %121 = arith.addf %116, %120 : vector<4x80xf32>
    %122 = vector.extract_strided_slice %96 {offsets = [0, 12], sizes = [4, 80], strides = [1, 1]} : vector<4x110xf32> to vector<4x80xf32>
    %c23 = arith.constant 23 : index
    %c0_81 = arith.constant 0 : index
    %c0_82 = arith.constant 0 : index
    %123 = vector.load %arg5[%c23, %c0_81, %c0_82] : memref<27x4x4xf32, #tpu.memory_space<vmem>>, vector<1x4x4xf32>
    %124 = vector.shape_cast %123 : vector<1x4x4xf32> to vector<4x4xf32>
    %cst_83 = arith.constant dense<0.000000e+00> : vector<4x80xf32>
    %125 = tpu.matmul %124, %122, %cst_83 {dimension_numbers = #tpu.dot_dimension_numbers<[1], [0], [0], [1], [0, 0, 1, 1], [], []>} : vector<4x4xf32>, vector<4x80xf32>, vector<4x80xf32> -> vector<4x80xf32>
    %126 = arith.addf %121, %125 : vector<4x80xf32>
    %127 = vector.extract_strided_slice %96 {offsets = [0, 20], sizes = [4, 80], strides = [1, 1]} : vector<4x110xf32> to vector<4x80xf32>
    %c24 = arith.constant 24 : index
    %c0_84 = arith.constant 0 : index
    %c0_85 = arith.constant 0 : index
    %128 = vector.load %arg5[%c24, %c0_84, %c0_85] : memref<27x4x4xf32, #tpu.memory_space<vmem>>, vector<1x4x4xf32>
    %129 = vector.shape_cast %128 : vector<1x4x4xf32> to vector<4x4xf32>
    %cst_86 = arith.constant dense<0.000000e+00> : vector<4x80xf32>
    %130 = tpu.matmul %129, %127, %cst_86 {dimension_numbers = #tpu.dot_dimension_numbers<[1], [0], [0], [1], [0, 0, 1, 1], [], []>} : vector<4x4xf32>, vector<4x80xf32>, vector<4x80xf32> -> vector<4x80xf32>
    %131 = arith.addf %126, %130 : vector<4x80xf32>
    %132 = vector.extract_strided_slice %96 {offsets = [0, 21], sizes = [4, 80], strides = [1, 1]} : vector<4x110xf32> to vector<4x80xf32>
    %c25 = arith.constant 25 : index
    %c0_87 = arith.constant 0 : index
    %c0_88 = arith.constant 0 : index
    %133 = vector.load %arg5[%c25, %c0_87, %c0_88] : memref<27x4x4xf32, #tpu.memory_space<vmem>>, vector<1x4x4xf32>
    %134 = vector.shape_cast %133 : vector<1x4x4xf32> to vector<4x4xf32>
    %cst_89 = arith.constant dense<0.000000e+00> : vector<4x80xf32>
    %135 = tpu.matmul %134, %132, %cst_89 {dimension_numbers = #tpu.dot_dimension_numbers<[1], [0], [0], [1], [0, 0, 1, 1], [], []>} : vector<4x4xf32>, vector<4x80xf32>, vector<4x80xf32> -> vector<4x80xf32>
    %136 = arith.addf %131, %135 : vector<4x80xf32>
    %137 = vector.extract_strided_slice %96 {offsets = [0, 22], sizes = [4, 80], strides = [1, 1]} : vector<4x110xf32> to vector<4x80xf32>
    %c26 = arith.constant 26 : index
    %c0_90 = arith.constant 0 : index
    %c0_91 = arith.constant 0 : index
    %138 = vector.load %arg5[%c26, %c0_90, %c0_91] : memref<27x4x4xf32, #tpu.memory_space<vmem>>, vector<1x4x4xf32>
    %139 = vector.shape_cast %138 : vector<1x4x4xf32> to vector<4x4xf32>
    %cst_92 = arith.constant dense<0.000000e+00> : vector<4x80xf32>
    %140 = tpu.matmul %139, %137, %cst_92 {dimension_numbers = #tpu.dot_dimension_numbers<[1], [0], [0], [1], [0, 0, 1, 1], [], []>} : vector<4x4xf32>, vector<4x80xf32>, vector<4x80xf32> -> vector<4x80xf32>
    %141 = arith.addf %136, %140 : vector<4x80xf32>
    %c0_93 = arith.constant 0 : index
    %c0_94 = arith.constant 0 : index
    %142 = vector.load %arg6[%c0_93, %c0_94] : memref<4x1xf32, #tpu.memory_space<vmem>>, vector<4x1xf32>
    %143 = vector.broadcast %142 : vector<4x1xf32> to vector<4x80xf32>
    %144 = arith.addf %141, %143 : vector<4x80xf32>
    %c0_95 = arith.constant 0 : index
    %c0_96 = arith.constant 0 : index
    %145 = vector.load %arg7[%c0_95, %c0_96] : memref<1x1xf32, #tpu.memory_space<vmem>>, vector<1x1xf32>
    %cst_97 = arith.constant 0.000000e+00 : f32
    %146 = vector.broadcast %cst_97 : f32 to vector<4x80xf32>
    %147 = arith.cmpf oge, %144, %146 : vector<4x80xf32>
    %148 = vector.broadcast %145 : vector<1x1xf32> to vector<4x80xf32>
    %149 = arith.mulf %144, %148 : vector<4x80xf32>
    %150 = arith.select %147, %144, %149 : vector<4x80xi1>, vector<4x80xf32>
    %151 = vector.shape_cast %150 : vector<4x80xf32> to vector<1x1x4x80xf32>
    %c0_98 = arith.constant 0 : index
    %c0_99 = arith.constant 0 : index
    %c0_100 = arith.constant 0 : index
    %c0_101 = arith.constant 0 : index
    %152 = vector.load %arg8[%c0_98, %c0_99, %c0_100, %c0_101] : memref<1x1x4x80xf32, #tpu.memory_space<vmem>>, vector<1x1x4x80xf32>
    tpu.vector_store %arg8[%c0_98, %c0_99, %c0_100, %c0_101], %151 {strides = array<i32>} : memref<1x1x4x80xf32, #tpu.memory_space<vmem>>, vector<1x1x4x80xf32>,
    return
  }
  func.func @transform_0(%arg0: i32, %arg1: i32) -> (i32, i32, i32, i32) {
    %c0_i32 = arith.constant 0 : i32
    %0 = arith.addi %arg1, %c0_i32 : i32
    %c0_i32_0 = arith.constant 0 : i32
    %c0_i32_1 = arith.constant 0 : i32
    %c0_i32_2 = arith.constant 0 : i32
    return %arg0, %0, %c0_i32_0, %c0_i32_1 : i32, i32, i32, i32
  }
  func.func @transform_1(%arg0: i32, %arg1: i32) -> (i32, i32, i32, i32) {
    %c1_i32 = arith.constant 1 : i32
    %0 = arith.addi %arg1, %c1_i32 : i32
    %c0_i32 = arith.constant 0 : i32
    %c0_i32_0 = arith.constant 0 : i32
    %c0_i32_1 = arith.constant 0 : i32
    return %arg0, %0, %c0_i32, %c0_i32_0 : i32, i32, i32, i32
  }
  func.func @transform_2(%arg0: i32, %arg1: i32) -> (i32, i32, i32, i32) {
    %c2_i32 = arith.constant 2 : i32
    %0 = arith.addi %arg1, %c2_i32 : i32
    %c0_i32 = arith.constant 0 : i32
    %c0_i32_0 = arith.constant 0 : i32
    %c0_i32_1 = arith.constant 0 : i32
    return %arg0, %0, %c0_i32, %c0_i32_0 : i32, i32, i32, i32
  }
  func.func @transform_3(%arg0: i32, %arg1: i32) -> (i32, i32, i32) {
    %c0_i32 = arith.constant 0 : i32
    %c0_i32_0 = arith.constant 0 : i32
    %c0_i32_1 = arith.constant 0 : i32
    %c0_i32_2 = arith.constant 0 : i32
    return %c0_i32, %c0_i32_0, %c0_i32_1 : i32, i32, i32
  }
  func.func @transform_4(%arg0: i32, %arg1: i32) -> (i32, i32) {
    %c0_i32 = arith.constant 0 : i32
    %c0_i32_0 = arith.constant 0 : i32
    %c0_i32_1 = arith.constant 0 : i32
    return %c0_i32, %c0_i32_0 : i32, i32
  }
  func.func @transform_5(%arg0: i32, %arg1: i32) -> (i32, i32) {
    %c0_i32 = arith.constant 0 : i32
    %c0_i32_0 = arith.constant 0 : i32
    %c0_i32_1 = arith.constant 0 : i32
    return %c0_i32, %c0_i32_0 : i32, i32
  }
  func.func @transform_6(%arg0: i32, %arg1: i32) -> (i32, i32, i32, i32) {
    %c0_i32 = arith.constant 0 : i32
    %c0_i32_0 = arith.constant 0 : i32
    %c0_i32_1 = arith.constant 0 : i32
    return %arg0, %arg1, %c0_i32, %c0_i32_0 : i32, i32, i32, i32
  }
}

</mosaic_0001>

<llo_original>
// kernel: tpu_custom_call.1
$region0: #{tpu_custom_call.1}
  #allocation0 [shape = 'u32[]', space=smem, size = 0x4, offset = 0x4, fixed_abs, tag = 'smem constant byte address 0x4 - core index']
  #allocation1 [shape = 'u32[72,128]{1,0:T(1,128)}', space=vmem, size = 0x9000, scoped, tag = 'internal scratch']
  #allocation2 [shape = 'f32[1,1]{1,0:T(1,128)S(1)}', space=vmem, size = 0x200, scoped, tag = 'scoped memory for tpu_custom_call.1']
  %s0 = inlined_call_operand.vmem [shape: f32[2,6,4,110], index: 0, kind: input, shape index: {}]
  %s1 = inlined_call_operand.vmem [shape: f32[2,6,4,110], index: 1, kind: input, shape index: {}]
  %s2 = inlined_call_operand.hbm [shape: f32[2,6,4,110], index: 2, kind: input, shape index: {}]
  %s3 = inlined_call_operand.vmem [shape: f32[27,4,4], index: 3, kind: input, shape index: {}]
  %s4 = inlined_call_operand.vmem [shape: f32[4,1], index: 4, kind: input, shape index: {}]
  %s5 = inlined_call_operand.<no memory space> [shape: f32[1,1], index: 5, kind: input, shape index: {}]
  %s6 = inlined_call_operand.hbm [shape: f32[2,4,4,80], index: 6, kind: output, shape index: {}]
  %s7 = sld [smem:[#allocation0]]
  $region61: #{tpu_custom_call.1} parent=0
    _
  %s9 = ssub.s32 1, %s7
  %s10 = scalar_select 0, %s9, %s7
  %v11 = vstv %s5
  %12 = vst [vmem:[#allocation2] sm:$0x1] %v11
  $region1: #{tpu_custom_call.1} parent=0
    #allocation3 [shape = 'u8[4096]{0}', space=vmem, size = 0x1000, scoped, tag = 'input window, operand 2']
    #allocation4 [shape = 's32[2]{0}', space=sflag, size = 0x8, scoped, tag = 'scoped memory for tpu_custom_call.1']
    #allocation5 [shape = 's32[2]{0}', space=sflag, size = 0x8, scoped, tag = 'scoped memory for tpu_custom_call.1']
    #allocation6 [shape = 'u8[4096]{0}', space=vmem, size = 0x1000, scoped, tag = 'output window, operand 0']
    %13 = vsyncpa [#allocation4], 0
    %s14 = scalar_lea.sflag [#allocation4], 1
    %15 = vsyncpa %s14, 0
    %16 = vsyncpa [#allocation5], 0
    %s17 = scalar_lea.sflag [#allocation5], 1
    %18 = vsyncpa %s17, 0
    loop: start=0, step=1, limit=10
    $region2: #{tpu_custom_call.1} parent=1 // loop_pre_header
      _
    $region3: #{tpu_custom_call.1} parent=1 // loop_header
      %s20 = sphi 0, %s24
      %p21 = scmp.ge.s32.totalorder %s20, 10
      %s27 = sphi 0, %s39
      %s28 = sphi 0, %s35
      %s29 = sphi 0, %s27
      %s30 = sphi 0, %s28
      %s31 = sphi 0, %s29
      %s32 = sphi 0, %s30
      %s44 = sphi 0, %s46
      %s47 = sphi 0, %s44
      %s48 = sphi 0, %s47
      %s64 = sphi 0, %s48
      %s74 = sphi 0, %s76
      %s77 = sphi 0, %s74
      %s78 = sphi 0, %s77
      %s94 = sphi 0, %s78
      %s104 = sphi 0, %s106
      %s107 = sphi 0, %s104
      %s108 = sphi 0, %s107
      %s124 = sphi 0, %s108
      %s128 = sphi 0, %s128
      %s130 = sphi 0, %s128
      %s131 = sphi 0, %s130
      %s145 = sphi 0, %s131
      %s149 = sphi 0, %s149
      %s151 = sphi 0, %s149
      %s152 = sphi 0, %s151
      %s166 = sphi 0, %s152
      %s170 = sphi 0, %s170
      %s172 = sphi 0, %s170
      %s173 = sphi 0, %s172
      %s187 = sphi 0, %s173
      %s195 = sphi 0, %s197
      %s198 = sphi 0, %s195
      %s199 = sphi 0, %s198
      %s215 = sphi 0, %s199
    $region4: #{tpu_custom_call.1} parent=1 // loop_header_branch
      %23 = sbr.rel (%p21) target = $region8
    $region5: #{tpu_custom_call.1} parent=1 // loop_body
      %s25 = ssub.s32 %s20, 1
      %s26 = ssub.s32 %s20, 2
      %s33 = sadd.s32 1, %s28
      %p34 = scmp.ge.s32.totalorder %s33, 4
      %s35 = scalar_select %p34, 0, %s33
      %s36 = sadd.s32 1, %s27
      %s37 = scalar_select %p34, %s36, %s27
      %p38 = scmp.ge.s32.totalorder %s37, 2
      %s39 = scalar_select %p38, 0, %s37
      %s40 = ssub.s32 %s27, %s39
      %s41 = ssub.s32 %s28, %s35
      %s42 = sor.u32 %s40, %s41
      %p43 = scmp.eq.s32.totalorder %s42, 0
      %s45 = sadd.s32 %s44, 1
      %s46 = scalar_select %p43, %s44, %s45
      %p49 = pneg %p43
      %p50 = scmp.eq.s32.totalorder %s20, 7
      %p51 = por %p49, %p50
      %p52 = scmp.ne.s32.totalorder %s44, %s47
      %p53 = scmp.eq.s32.totalorder %s20, 0
      %p54 = por %p52, %p53
      %p55 = scmp.ne.s32.totalorder %s44, %s47
      %p56 = scmp.eq.s32.totalorder %s25, 7
      %p57 = por %p55, %p56
      %p58 = scmp.ne.s32.totalorder %s47, %s48
      %p59 = scmp.eq.s32.totalorder %s25, 0
      %p60 = por %p58, %p59
      %p61 = scmp.ne.s32.totalorder %s47, %s48
      %p62 = scmp.eq.s32.totalorder %s26, 7
      %p63 = por %p61, %p62
      %p65 = scmp.ne.s32.totalorder %s48, %s64
      %p66 = scmp.eq.s32.totalorder %s26, 0
      %p67 = por %p65, %p66
      %s68 = sadd.s32 %s28, 1
      %s69 = sadd.s32 %s35, 1
      %s70 = ssub.s32 %s27, %s39
      %s71 = ssub.s32 %s68, %s69
      %s72 = sor.u32 %s70, %s71
      %p73 = scmp.eq.s32.totalorder %s72, 0
      %s75 = sadd.s32 %s74, 1
      %s76 = scalar_select %p73, %s74, %s75
      %p79 = pneg %p73
      %p80 = scmp.eq.s32.totalorder %s20, 7
      %p81 = por %p79, %p80
      %p82 = scmp.ne.s32.totalorder %s74, %s77
      %p83 = scmp.eq.s32.totalorder %s20, 0
      %p84 = por %p82, %p83
      %p85 = scmp.ne.s32.totalorder %s74, %s77
      %p86 = scmp.eq.s32.totalorder %s25, 7
      %p87 = por %p85, %p86
      %p88 = scmp.ne.s32.totalorder %s77, %s78
      %p89 = scmp.eq.s32.totalorder %s25, 0
      %p90 = por %p88, %p89
      %p91 = scmp.ne.s32.totalorder %s77, %s78
      %p92 = scmp.eq.s32.totalorder %s26, 7
      %p93 = por %p91, %p92
      %p95 = scmp.ne.s32.totalorder %s78, %s94
      %p96 = scmp.eq.s32.totalorder %s26, 0
      %p97 = por %p95, %p96
      %s98 = sadd.s32 %s28, 2
      %s99 = sadd.s32 %s35, 2
      %s100 = ssub.s32 %s27, %s39
      %s101 = ssub.s32 %s98, %s99
      %s102 = sor.u32 %s100, %s101
      %p103 = scmp.eq.s32.totalorder %s102, 0
      %s105 = sadd.s32 %s104, 1
      %s106 = scalar_select %p103, %s104, %s105
      %p109 = pneg %p103
      %p110 = scmp.eq.s32.totalorder %s20, 7
      %p111 = por %p109, %p110
      %p112 = scmp.ne.s32.totalorder %s104, %s107
      %p113 = scmp.eq.s32.totalorder %s20, 0
      %p114 = por %p112, %p113
      %p115 = scmp.ne.s32.totalorder %s104, %s107
      %p116 = scmp.eq.s32.totalorder %s25, 7
      %p117 = por %p115, %p116
      %p118 = scmp.ne.s32.totalorder %s107, %s108
      %p119 = scmp.eq.s32.totalorder %s25, 0
      %p120 = por %p118, %p119
      %p121 = scmp.ne.s32.totalorder %s107, %s108
      %p122 = scmp.eq.s32.totalorder %s26, 7
      %p123 = por %p121, %p122
      %p125 = scmp.ne.s32.totalorder %s108, %s124
      %p126 = scmp.eq.s32.totalorder %s26, 0
      %p127 = por %p125, %p126
      %s129 = sadd.s32 %s128, 1
      %p132 = scmp.eq.s32.totalorder %s20, 7
      %p133 = scmp.ne.s32.totalorder %s128, %s130
      %p134 = scmp.eq.s32.totalorder %s20, 0
      %p135 = por %p133, %p134
      %p136 = scmp.ne.s32.totalorder %s128, %s130
      %p137 = scmp.eq.s32.totalorder %s25, 7
      %p138 = por %p136, %p137
      %p139 = scmp.ne.s32.totalorder %s130, %s131
      %p140 = scmp.eq.s32.totalorder %s25, 0
      %p141 = por %p139, %p140
      %p142 = scmp.ne.s32.totalorder %s130, %s131
      %p143 = scmp.eq.s32.totalorder %s26, 7
      %p144 = por %p142, %p143
      %p146 = scmp.ne.s32.totalorder %s131, %s145
      %p147 = scmp.eq.s32.totalorder %s26, 0
      %p148 = por %p146, %p147
      %s150 = sadd.s32 %s149, 1
      %p153 = scmp.eq.s32.totalorder %s20, 7
      %p154 = scmp.ne.s32.totalorder %s149, %s151
      %p155 = scmp.eq.s32.totalorder %s20, 0
      %p156 = por %p154, %p155
      %p157 = scmp.ne.s32.totalorder %s149, %s151
      %p158 = scmp.eq.s32.totalorder %s25, 7
      %p159 = por %p157, %p158
      %p160 = scmp.ne.s32.totalorder %s151, %s152
      %p161 = scmp.eq.s32.totalorder %s25, 0
      %p162 = por %p160, %p161
      %p163 = scmp.ne.s32.totalorder %s151, %s152
      %p164 = scmp.eq.s32.totalorder %s26, 7
      %p165 = por %p163, %p164
      %p167 = scmp.ne.s32.totalorder %s152, %s166
      %p168 = scmp.eq.s32.totalorder %s26, 0
      %p169 = por %p167, %p168
      %s171 = sadd.s32 %s170, 1
      %p174 = scmp.eq.s32.totalorder %s20, 7
      %p175 = scmp.ne.s32.totalorder %s170, %s172
      %p176 = scmp.eq.s32.totalorder %s20, 0
      %p177 = por %p175, %p176
      %p178 = scmp.ne.s32.totalorder %s170, %s172
      %p179 = scmp.eq.s32.totalorder %s25, 7
      %p180 = por %p178, %p179
      %p181 = scmp.ne.s32.totalorder %s172, %s173
      %p182 = scmp.eq.s32.totalorder %s25, 0
      %p183 = por %p181, %p182
      %p184 = scmp.ne.s32.totalorder %s172, %s173
      %p185 = scmp.eq.s32.totalorder %s26, 7
      %p186 = por %p184, %p185
      %p188 = scmp.ne.s32.totalorder %s173, %s187
      %p189 = scmp.eq.s32.totalorder %s26, 0
      %p190 = por %p188, %p189
      %s191 = ssub.s32 %s27, %s39
      %s192 = ssub.s32 %s28, %s35
      %s193 = sor.u32 %s191, %s192
      %p194 = scmp.eq.s32.totalorder %s193, 0
      %s196 = sadd.s32 %s195, 1
      %s197 = scalar_select %p194, %s195, %s196
      %p200 = pneg %p194
      %p201 = scmp.eq.s32.totalorder %s20, 7
      %p202 = por %p200, %p201
      %p203 = scmp.ne.s32.totalorder %s195, %s198
      %p204 = scmp.eq.s32.totalorder %s20, 0
      %p205 = por %p203, %p204
      %p206 = scmp.ne.s32.totalorder %s195, %s198
      %p207 = scmp.eq.s32.totalorder %s25, 7
      %p208 = por %p206, %p207
      %p209 = scmp.ne.s32.totalorder %s198, %s199
      %p210 = scmp.eq.s32.totalorder %s25, 0
      %p211 = por %p209, %p210
      %p212 = scmp.ne.s32.totalorder %s198, %s199
      %p213 = scmp.eq.s32.totalorder %s26, 7
      %p214 = por %p212, %p213
      %p216 = scmp.ne.s32.totalorder %s199, %s215
      %p217 = scmp.eq.s32.totalorder %s26, 0
      %p218 = por %p216, %p217
      %p219 = scmp.le.s32.totalorder 1, %s20
      %p220 = scmp.lt.s32.totalorder %s20, 9
      %p221 = pnand %p219, %p220
      %p222 = pneg %p221
      // Predicated region
      $region9: #{tpu_custom_call.1} parent=5 // pred_check
        _
      $region10: #{tpu_custom_call.1} parent=5 // pred_check_branch
        %224 = sbr.rel (%p221) target = $region12
      $region11: #{tpu_custom_call.1} parent=5 // pred_region
        %s225 = ssub.s32 %s20, 1
        // Predicated region
        $region13: #{tpu_custom_call.1} parent=11 // pred_check
          %p226 = pneg %p141
        $region14: #{tpu_custom_call.1} parent=11 // pred_check_branch
          %228 = sbr.rel (%p226) target = $region16
        $region15: #{tpu_custom_call.1} parent=11 // pred_region
          _
        $region16: #{tpu_custom_call.1} parent=11 // pred_fallthru
          _
        // Predicated region
        $region17: #{tpu_custom_call.1} parent=11 // pred_check
          %p229 = pneg %p162
        $region18: #{tpu_custom_call.1} parent=11 // pred_check_branch
          %231 = sbr.rel (%p229) target = $region20
        $region19: #{tpu_custom_call.1} parent=11 // pred_region
          _
        $region20: #{tpu_custom_call.1} parent=11 // pred_fallthru
          _
        // Predicated region
        $region21: #{tpu_custom_call.1} parent=11 // pred_check
          %p232 = pneg %p183
        $region22: #{tpu_custom_call.1} parent=11 // pred_check_branch
          %234 = sbr.rel (%p232) target = $region24
        $region23: #{tpu_custom_call.1} parent=11 // pred_region
          _
        $region24: #{tpu_custom_call.1} parent=11 // pred_fallthru
          _
      $region12: #{tpu_custom_call.1} parent=5 // pred_fallthru
        _
      %p235 = scmp.lt.s32.totalorder %s20, 8
      // Predicated region
      $region25: #{tpu_custom_call.1} parent=5 // pred_check
        %p236 = pneg %p235
      $region26: #{tpu_custom_call.1} parent=5 // pred_check_branch
        %238 = sbr.rel (%p236) target = $region28
      $region27: #{tpu_custom_call.1} parent=5 // pred_region
        // Predicated region
        $region29: #{tpu_custom_call.1} parent=27 // pred_check
          %p239 = pneg %p54
        $region30: #{tpu_custom_call.1} parent=27 // pred_check_branch
          %241 = sbr.rel (%p239) target = $region32
        $region31: #{tpu_custom_call.1} parent=27 // pred_region
          %p242 = scmp.lt.s32.totalorder %s27, 1
          %s243 = scalar_select %p242, %s27, 1
          %p244 = scmp.lt.s32.totalorder %s28, 5
          %s245 = scalar_select %p244, %s28, 5
          %s246 = smul.addr %s243, 6
          %s247 = sadd.s32 %s245, %s246
          %s248 = smul.addr %s247, 4
          %s249 = scalar_lea.vmem %s0, %s248
        $region32: #{tpu_custom_call.1} parent=27 // pred_fallthru
          _
        // Predicated region
        $region33: #{tpu_custom_call.1} parent=27 // pred_check
          %p250 = pneg %p84
        $region34: #{tpu_custom_call.1} parent=27 // pred_check_branch
          %252 = sbr.rel (%p250) target = $region36
        $region35: #{tpu_custom_call.1} parent=27 // pred_region
          %s253 = sadd.s32 %s28, 1
          %p254 = scmp.lt.s32.totalorder %s27, 1
          %s255 = scalar_select %p254, %s27, 1
          %p256 = scmp.lt.s32.totalorder %s253, 5
          %s257 = scalar_select %p256, %s253, 5
          %s258 = smul.addr %s255, 6
          %s259 = sadd.s32 %s257, %s258
          %s260 = smul.addr %s259, 4
          %s261 = scalar_lea.vmem %s1, %s260
          %s262 = sadd.s32 %s28, 1
        $region36: #{tpu_custom_call.1} parent=27 // pred_fallthru
          _
        // Predicated region
        $region37: #{tpu_custom_call.1} parent=27 // pred_check
          %p263 = pneg %p114
        $region38: #{tpu_custom_call.1} parent=27 // pred_check_branch
          %265 = sbr.rel (%p263) target = $region40
        $region39: #{tpu_custom_call.1} parent=27 // pred_region
          %s266 = sand.u32 %s104, 1
          %s267 = scalar_lea.sflag [#allocation4], %s266
          %s268 = sand.u32 %s104, 1
          %s269 = smul.addr %s268, 4
          %s270 = scalar_lea.vmem [#allocation3], %s269
          %s271 = sadd.s32 %s28, 2
          %273 = vsyncadd %s267, 0
          %s274 = smul.addr %s27, 6
          %s275 = sadd.s32 %s271, %s274
          %s276 = smul.addr %s275, 4
          %s277 = scalar_lea.hbm %s2, %s276
          %s279 = sshll.u32 %s277, 4
          %s280 = int_to_ptr.hbm [resolvable:$true] %s279
          %s281 = sshll.u32 %s270, 4
          %s282 = int_to_ptr.vmem [resolvable:$true] %s281
          %284 = dma.hbm_to_vmem [thread:$0]  %s280, 64, %s282, %s267
        $region40: #{tpu_custom_call.1} parent=27 // pred_fallthru
          _
      $region28: #{tpu_custom_call.1} parent=5 // pred_fallthru
        _
      %p285 = scmp.le.s32.totalorder 1, %s20
      %p286 = scmp.lt.s32.totalorder %s20, 9
      %p287 = pnand %p285, %p286
      %p288 = pneg %p287
      // Predicated region
      $region41: #{tpu_custom_call.1} parent=5 // pred_check
        _
      $region42: #{tpu_custom_call.1} parent=5 // pred_check_branch
        %290 = sbr.rel (%p287) target = $region44
      $region43: #{tpu_custom_call.1} parent=5 // pred_region
        %s291 = ssub.s32 %s20, 1
        %s292 = sand.u32 %s107, 1
        %s293 = scalar_lea.sflag [#allocation4], %s292
        %s294 = sand.u32 %s107, 1
        %s295 = smul.addr %s294, 4
        %s296 = scalar_lea.vmem [#allocation3], %s295
        // Predicated region
        $region45: #{tpu_custom_call.1} parent=43 // pred_check
          %p297 = pneg %p120
        $region46: #{tpu_custom_call.1} parent=43 // pred_check_branch
          %299 = sbr.rel (%p297) target = $region48
        $region47: #{tpu_custom_call.1} parent=43 // pred_region
          %301 = dma.done %s293, 64
        $region48: #{tpu_custom_call.1} parent=43 // pred_fallthru
          _
        %p302 = scmp.lt.s32.totalorder %s29, 1
        %s303 = scalar_select %p302, %s29, 1
        %p304 = scmp.lt.s32.totalorder %s30, 5
        %s305 = scalar_select %p304, %s30, 5
        %s306 = smul.addr %s303, 6
        %s307 = sadd.s32 %s305, %s306
        %s308 = smul.addr %s307, 4
        %s309 = scalar_lea.vmem %s0, %s308
        %p310 = pneg %p60
        %p311 = pneg %p57
        %s312 = sadd.s32 %s30, 1
        %p313 = scmp.lt.s32.totalorder %s29, 1
        %s314 = scalar_select %p313, %s29, 1
        %p315 = scmp.lt.s32.totalorder %s312, 5
        %s316 = scalar_select %p315, %s312, 5
        %s317 = smul.addr %s314, 6
        %s318 = sadd.s32 %s316, %s317
        %s319 = smul.addr %s318, 4
        %s320 = scalar_lea.vmem %s1, %s319
        %p321 = pneg %p90
        %p322 = pneg %p87
        %s323 = sand.u32 %s107, 1
        %s324 = scalar_lea.sflag [#allocation4], %s323
        %s325 = sand.u32 %s107, 1
        %s326 = smul.addr %s325, 4
        %s327 = scalar_lea.vmem [#allocation3], %s326
        %p328 = pneg %p120
        %p329 = pneg %p117
        %p330 = pneg %p141
        %p331 = pneg %p138
        %p332 = pneg %p162
        %p333 = pneg %p159
        %p334 = pneg %p183
        %p335 = pneg %p180
        %p336 = pneg %p211
        %p337 = pneg %p208
        %s338 = sand.u32 %s198, 1
        %s339 = scalar_lea.sflag [#allocation5], %s338
        %s340 = sand.u32 %s198, 1
        %s341 = smul.addr %s340, 4
        %s342 = scalar_lea.vmem [#allocation6], %s341
        %p343 = scmp.lt.s32.totalorder %s29, 1
        %s344 = scalar_select %p343, %s29, 1
        %p345 = scmp.lt.s32.totalorder %s30, 5
        %s346 = scalar_select %p345, %s30, 5
        %s347 = smul.addr %s344, 6
        %s348 = sadd.s32 %s346, %s347
        %s349 = smul.addr %s348, 4
        %s350 = scalar_lea.vmem %s0, %s349
        %s351 = sadd.s32 %s30, 1
        %p352 = scmp.lt.s32.totalorder %s29, 1
        %s353 = scalar_select %p352, %s29, 1
        %p354 = scmp.lt.s32.totalorder %s351, 5
        %s355 = scalar_select %p354, %s351, 5
        %s356 = smul.addr %s353, 6
        %s357 = sadd.s32 %s355, %s356
        %s358 = smul.addr %s357, 4
        %s359 = scalar_lea.vmem %s1, %s358
        %s360 = sadd.s32 %s30, 1
        %s361 = sadd.s32 %s30, 2
        %v362 = vld [vmem:[%s350] sm:$0xf]
        %v363 = vld [vmem:[%s3] sm:$0xf]
        %s364 = scalar_lea.vmem %s3, 4
        %v365 = vld [vmem:[%s364] sm:$0xf]
        %367 = vrot.lane.b32.xlu0 %v362, 127
        %v368 = vpop.permute.xlu0 %367
        %vm369 = vcmask 31744
        %v371 = vsel %vm369, %v365, 0
        %vm373 = vcmask 1043456
        %v374 = vsel %vm373, %v368, 0
        %376 = vmatpush.msra.mxu0 0.0
        %377 = vmatpush.msra.mxu0 0.0
        %378 = vmatpush.msra.mxu0 0.0
        %379 = vmatpush.msra.mxu0 0.0
        %380 = vmatpush.msra.mxu0 0.0
        %381 = vmatpush.msra.mxu0 0.0
        %382 = vmatpush.msra.mxu0 0.0
        %383 = vmatpush.msra.mxu0 0.0
        %384 = vmatpush.msra.mxu0 0.0
        %385 = vmatpush.msra.mxu0 0.0
        %386 = vmatpush.msra.mxu0 0.0
        %387 = vmatpush.msra.mxu0 0.0
        %388 = vmatpush.msra.mxu0 0.0
        %389 = vmatpush.msra.mxu0 0.0
        %390 = vmatpush.msra.mxu0 0.0
        %391 = vmatpush.msra.mxu0 %v374
        %392 = vmatmul.f32.gmra.mxu0 %v371
        %v393 = vpop.f32.mrf.mxu0
        %v394 = vadd.f32 0.0, %v393
        %395 = vdwg.mxu0
        %v397 = vsel %vm369, %v363, 0
        %v399 = vsel %vm373, %v362, 0
        %401 = vmatpush.msra.mxu0 0.0
        %402 = vmatpush.msra.mxu0 0.0
        %403 = vmatpush.msra.mxu0 0.0
        %404 = vmatpush.msra.mxu0 0.0
        %405 = vmatpush.msra.mxu0 0.0
        %406 = vmatpush.msra.mxu0 0.0
        %407 = vmatpush.msra.mxu0 0.0
        %408 = vmatpush.msra.mxu0 0.0
        %409 = vmatpush.msra.mxu0 0.0
        %410 = vmatpush.msra.mxu0 0.0
        %411 = vmatpush.msra.mxu0 0.0
        %412 = vmatpush.msra.mxu0 0.0
        %413 = vmatpush.msra.mxu0 0.0
        %414 = vmatpush.msra.mxu0 0.0
        %415 = vmatpush.msra.mxu0 0.0
        %416 = vmatpush.msra.mxu0 %v399
        %417 = vmatmul.f32.gmra.mxu0 %v397
        %v418 = vpop.f32.mrf.mxu0
        %v419 = vadd.f32 %v394, %v418
        %420 = vdwg.mxu0
        %s421 = scalar_lea.vmem %s3, 8
        %v422 = vld [vmem:[%s421] sm:$0xf]
        %423 = vrot.lane.b32.xlu0 %v362, 126
        %v424 = vpop.permute.xlu0 %423
        %v426 = vsel %vm369, %v422, 0
        %v428 = vsel %vm373, %v424, 0
        %430 = vmatpush.msra.mxu0 0.0
        %431 = vmatpush.msra.mxu0 0.0
        %432 = vmatpush.msra.mxu0 0.0
        %433 = vmatpush.msra.mxu0 0.0
        %434 = vmatpush.msra.mxu0 0.0
        %435 = vmatpush.msra.mxu0 0.0
        %436 = vmatpush.msra.mxu0 0.0
        %437 = vmatpush.msra.mxu0 0.0
        %438 = vmatpush.msra.mxu0 0.0
        %439 = vmatpush.msra.mxu0 0.0
        %440 = vmatpush.msra.mxu0 0.0
        %441 = vmatpush.msra.mxu0 0.0
        %442 = vmatpush.msra.mxu0 0.0
        %443 = vmatpush.msra.mxu0 0.0
        %444 = vmatpush.msra.mxu0 0.0
        %445 = vmatpush.msra.mxu0 %v428
        %446 = vmatmul.f32.gmra.mxu0 %v426
        %v447 = vpop.f32.mrf.mxu0
        %v448 = vadd.f32 0.0, %v447
        %449 = vdwg.mxu0
        %v450 = vadd.f32 %v419, %v448
        %s451 = scalar_lea.vmem %s3, 12
        %v452 = vld [vmem:[%s451] sm:$0xf]
        %453 = vrot.lane.b32.xlu0 %v362, 118
        %v454 = vpop.permute.xlu0 %453
        %v456 = vsel %vm369, %v452, 0
        %v458 = vsel %vm373, %v454, 0
        %460 = vmatpush.msra.mxu0 0.0
        %461 = vmatpush.msra.mxu0 0.0
        %462 = vmatpush.msra.mxu0 0.0
        %463 = vmatpush.msra.mxu0 0.0
        %464 = vmatpush.msra.mxu0 0.0
        %465 = vmatpush.msra.mxu0 0.0
        %466 = vmatpush.msra.mxu0 0.0
        %467 = vmatpush.msra.mxu0 0.0
        %468 = vmatpush.msra.mxu0 0.0
        %469 = vmatpush.msra.mxu0 0.0
        %470 = vmatpush.msra.mxu0 0.0
        %471 = vmatpush.msra.mxu0 0.0
        %472 = vmatpush.msra.mxu0 0.0
        %473 = vmatpush.msra.mxu0 0.0
        %474 = vmatpush.msra.mxu0 0.0
        %475 = vmatpush.msra.mxu0 %v458
        %476 = vmatmul.f32.gmra.mxu0 %v456
        %v477 = vpop.f32.mrf.mxu0
        %v478 = vadd.f32 0.0, %v477
        %479 = vdwg.mxu0
        %v480 = vadd.f32 %v450, %v478
        %s481 = scalar_lea.vmem %s3, 16
        %v482 = vld [vmem:[%s481] sm:$0xf]
        %483 = vrot.lane.b32.xlu0 %v362, 117
        %v484 = vpop.permute.xlu0 %483
        %v486 = vsel %vm369, %v482, 0
        %v488 = vsel %vm373, %v484, 0
        %490 = vmatpush.msra.mxu0 0.0
        %491 = vmatpush.msra.mxu0 0.0
        %492 = vmatpush.msra.mxu0 0.0
        %493 = vmatpush.msra.mxu0 0.0
        %494 = vmatpush.msra.mxu0 0.0
        %495 = vmatpush.msra.mxu0 0.0
        %496 = vmatpush.msra.mxu0 0.0
        %497 = vmatpush.msra.mxu0 0.0
        %498 = vmatpush.msra.mxu0 0.0
        %499 = vmatpush.msra.mxu0 0.0
        %500 = vmatpush.msra.mxu0 0.0
        %501 = vmatpush.msra.mxu0 0.0
        %502 = vmatpush.msra.mxu0 0.0
        %503 = vmatpush.msra.mxu0 0.0
        %504 = vmatpush.msra.mxu0 0.0
        %505 = vmatpush.msra.mxu0 %v488
        %506 = vmatmul.f32.gmra.mxu0 %v486
        %v507 = vpop.f32.mrf.mxu0
        %v508 = vadd.f32 0.0, %v507
        %509 = vdwg.mxu0
        %v510 = vadd.f32 %v480, %v508
        %s511 = scalar_lea.vmem %s3, 20
        %v512 = vld [vmem:[%s511] sm:$0xf]
        %513 = vrot.lane.b32.xlu0 %v362, 116
        %v514 = vpop.permute.xlu0 %513
        %v516 = vsel %vm369, %v512, 0
        %v518 = vsel %vm373, %v514, 0
        %520 = vmatpush.msra.mxu0 0.0
        %521 = vmatpush.msra.mxu0 0.0
        %522 = vmatpush.msra.mxu0 0.0
        %523 = vmatpush.msra.mxu0 0.0
        %524 = vmatpush.msra.mxu0 0.0
        %525 = vmatpush.msra.mxu0 0.0
        %526 = vmatpush.msra.mxu0 0.0
        %527 = vmatpush.msra.mxu0 0.0
        %528 = vmatpush.msra.mxu0 0.0
        %529 = vmatpush.msra.mxu0 0.0
        %530 = vmatpush.msra.mxu0 0.0
        %531 = vmatpush.msra.mxu0 0.0
        %532 = vmatpush.msra.mxu0 0.0
        %533 = vmatpush.msra.mxu0 0.0
        %534 = vmatpush.msra.mxu0 0.0
        %535 = vmatpush.msra.mxu0 %v518
        %536 = vmatmul.f32.gmra.mxu0 %v516
        %v537 = vpop.f32.mrf.mxu0
        %v538 = vadd.f32 0.0, %v537
        %539 = vdwg.mxu0
        %v540 = vadd.f32 %v510, %v538
        %s541 = scalar_lea.vmem %s3, 24
        %v542 = vld [vmem:[%s541] sm:$0xf]
        %543 = vrot.lane.b32.xlu0 %v362, 108
        %v544 = vpop.permute.xlu0 %543
        %v546 = vsel %vm369, %v542, 0
        %v548 = vsel %vm373, %v544, 0
        %550 = vmatpush.msra.mxu0 0.0
        %551 = vmatpush.msra.mxu0 0.0
        %552 = vmatpush.msra.mxu0 0.0
        %553 = vmatpush.msra.mxu0 0.0
        %554 = vmatpush.msra.mxu0 0.0
        %555 = vmatpush.msra.mxu0 0.0
        %556 = vmatpush.msra.mxu0 0.0
        %557 = vmatpush.msra.mxu0 0.0
        %558 = vmatpush.msra.mxu0 0.0
        %559 = vmatpush.msra.mxu0 0.0
        %560 = vmatpush.msra.mxu0 0.0
        %561 = vmatpush.msra.mxu0 0.0
        %562 = vmatpush.msra.mxu0 0.0
        %563 = vmatpush.msra.mxu0 0.0
        %564 = vmatpush.msra.mxu0 0.0
        %565 = vmatpush.msra.mxu0 %v548
        %566 = vmatmul.f32.gmra.mxu0 %v546
        %v567 = vpop.f32.mrf.mxu0
        %v568 = vadd.f32 0.0, %v567
        %569 = vdwg.mxu0
        %v570 = vadd.f32 %v540, %v568
        %s571 = scalar_lea.vmem %s3, 28
        %v572 = vld [vmem:[%s571] sm:$0xf]
        %573 = vrot.lane.b32.xlu0 %v362, 107
        %v574 = vpop.permute.xlu0 %573
        %v576 = vsel %vm369, %v572, 0
        %v578 = vsel %vm373, %v574, 0
        %580 = vmatpush.msra.mxu0 0.0
        %581 = vmatpush.msra.mxu0 0.0
        %582 = vmatpush.msra.mxu0 0.0
        %583 = vmatpush.msra.mxu0 0.0
        %584 = vmatpush.msra.mxu0 0.0
        %585 = vmatpush.msra.mxu0 0.0
        %586 = vmatpush.msra.mxu0 0.0
        %587 = vmatpush.msra.mxu0 0.0
        %588 = vmatpush.msra.mxu0 0.0
        %589 = vmatpush.msra.mxu0 0.0
        %590 = vmatpush.msra.mxu0 0.0
        %591 = vmatpush.msra.mxu0 0.0
        %592 = vmatpush.msra.mxu0 0.0
        %593 = vmatpush.msra.mxu0 0.0
        %594 = vmatpush.msra.mxu0 0.0
        %595 = vmatpush.msra.mxu0 %v578
        %596 = vmatmul.f32.gmra.mxu0 %v576
        %v597 = vpop.f32.mrf.mxu0
        %v598 = vadd.f32 0.0, %v597
        %599 = vdwg.mxu0
        %v600 = vadd.f32 %v570, %v598
        %s601 = scalar_lea.vmem %s3, 32
        %v602 = vld [vmem:[%s601] sm:$0xf]
        %603 = vrot.lane.b32.xlu0 %v362, 106
        %v604 = vpop.permute.xlu0 %603
        %v606 = vsel %vm369, %v602, 0
        %v608 = vsel %vm373, %v604, 0
        %610 = vmatpush.msra.mxu0 0.0
        %611 = vmatpush.msra.mxu0 0.0
        %612 = vmatpush.msra.mxu0 0.0
        %613 = vmatpush.msra.mxu0 0.0
        %614 = vmatpush.msra.mxu0 0.0
        %615 = vmatpush.msra.mxu0 0.0
        %616 = vmatpush.msra.mxu0 0.0
        %617 = vmatpush.msra.mxu0 0.0
        %618 = vmatpush.msra.mxu0 0.0
        %619 = vmatpush.msra.mxu0 0.0
        %620 = vmatpush.msra.mxu0 0.0
        %621 = vmatpush.msra.mxu0 0.0
        %622 = vmatpush.msra.mxu0 0.0
        %623 = vmatpush.msra.mxu0 0.0
        %624 = vmatpush.msra.mxu0 0.0
        %625 = vmatpush.msra.mxu0 %v608
        %626 = vmatmul.f32.gmra.mxu0 %v606
        %v627 = vpop.f32.mrf.mxu0
        %v628 = vadd.f32 0.0, %v627
        %629 = vdwg.mxu0
        %v630 = vadd.f32 %v600, %v628
        %v631 = vld [vmem:[%s359] sm:$0xf]
        %s632 = scalar_lea.vmem %s3, 36
        %v633 = vld [vmem:[%s632] sm:$0xf]
        %v635 = vsel %vm369, %v633, 0
        %v638 = vsel %vm373, %v631, 0
        %640 = vmatpush.msra.mxu0 0.0
        %641 = vmatpush.msra.mxu0 0.0
        %642 = vmatpush.msra.mxu0 0.0
        %643 = vmatpush.msra.mxu0 0.0
        %644 = vmatpush.msra.mxu0 0.0
        %645 = vmatpush.msra.mxu0 0.0
        %646 = vmatpush.msra.mxu0 0.0
        %647 = vmatpush.msra.mxu0 0.0
        %648 = vmatpush.msra.mxu0 0.0
        %649 = vmatpush.msra.mxu0 0.0
        %650 = vmatpush.msra.mxu0 0.0
        %651 = vmatpush.msra.mxu0 0.0
        %652 = vmatpush.msra.mxu0 0.0
        %653 = vmatpush.msra.mxu0 0.0
        %654 = vmatpush.msra.mxu0 0.0
        %655 = vmatpush.msra.mxu0 %v638
        %656 = vmatmul.f32.gmra.mxu0 %v635
        %v657 = vpop.f32.mrf.mxu0
        %v658 = vadd.f32 0.0, %v657
        %659 = vdwg.mxu0
        %v660 = vadd.f32 %v630, %v658
        %s661 = scalar_lea.vmem %s3, 40
        %v662 = vld [vmem:[%s661] sm:$0xf]
        %663 = vrot.lane.b32.xlu0 %v631, 127
        %v664 = vpop.permute.xlu0 %663
        %v666 = vsel %vm369, %v662, 0
        %v668 = vsel %vm373, %v664, 0
        %670 = vmatpush.msra.mxu0 0.0
        %671 = vmatpush.msra.mxu0 0.0
        %672 = vmatpush.msra.mxu0 0.0
        %673 = vmatpush.msra.mxu0 0.0
        %674 = vmatpush.msra.mxu0 0.0
        %675 = vmatpush.msra.mxu0 0.0
        %676 = vmatpush.msra.mxu0 0.0
        %677 = vmatpush.msra.mxu0 0.0
        %678 = vmatpush.msra.mxu0 0.0
        %679 = vmatpush.msra.mxu0 0.0
        %680 = vmatpush.msra.mxu0 0.0
        %681 = vmatpush.msra.mxu0 0.0
        %682 = vmatpush.msra.mxu0 0.0
        %683 = vmatpush.msra.mxu0 0.0
        %684 = vmatpush.msra.mxu0 0.0
        %685 = vmatpush.msra.mxu0 %v668
        %686 = vmatmul.f32.gmra.mxu0 %v666
        %v687 = vpop.f32.mrf.mxu0
        %v688 = vadd.f32 0.0, %v687
        %689 = vdwg.mxu0
        %v690 = vadd.f32 %v660, %v688
        %s691 = scalar_lea.vmem %s3, 44
        %v692 = vld [vmem:[%s691] sm:$0xf]
        %693 = vrot.lane.b32.xlu0 %v631, 126
        %v694 = vpop.permute.xlu0 %693
        %v696 = vsel %vm369, %v692, 0
        %v698 = vsel %vm373, %v694, 0
        %700 = vmatpush.msra.mxu0 0.0
        %701 = vmatpush.msra.mxu0 0.0
        %702 = vmatpush.msra.mxu0 0.0
        %703 = vmatpush.msra.mxu0 0.0
        %704 = vmatpush.msra.mxu0 0.0
        %705 = vmatpush.msra.mxu0 0.0
        %706 = vmatpush.msra.mxu0 0.0
        %707 = vmatpush.msra.mxu0 0.0
        %708 = vmatpush.msra.mxu0 0.0
        %709 = vmatpush.msra.mxu0 0.0
        %710 = vmatpush.msra.mxu0 0.0
        %711 = vmatpush.msra.mxu0 0.0
        %712 = vmatpush.msra.mxu0 0.0
        %713 = vmatpush.msra.mxu0 0.0
        %714 = vmatpush.msra.mxu0 0.0
        %715 = vmatpush.msra.mxu0 %v698
        %716 = vmatmul.f32.gmra.mxu0 %v696
        %v717 = vpop.f32.mrf.mxu0
        %v718 = vadd.f32 0.0, %v717
        %719 = vdwg.mxu0
        %v720 = vadd.f32 %v690, %v718
        %s721 = scalar_lea.vmem %s3, 48
        %v722 = vld [vmem:[%s721] sm:$0xf]
        %723 = vrot.lane.b32.xlu0 %v631, 118
        %v724 = vpop.permute.xlu0 %723
        %v726 = vsel %vm369, %v722, 0
        %v728 = vsel %vm373, %v724, 0
        %730 = vmatpush.msra.mxu0 0.0
        %731 = vmatpush.msra.mxu0 0.0
        %732 = vmatpush.msra.mxu0 0.0
        %733 = vmatpush.msra.mxu0 0.0
        %734 = vmatpush.msra.mxu0 0.0
        %735 = vmatpush.msra.mxu0 0.0
        %736 = vmatpush.msra.mxu0 0.0
        %737 = vmatpush.msra.mxu0 0.0
        %738 = vmatpush.msra.mxu0 0.0
        %739 = vmatpush.msra.mxu0 0.0
        %740 = vmatpush.msra.mxu0 0.0
        %741 = vmatpush.msra.mxu0 0.0
        %742 = vmatpush.msra.mxu0 0.0
        %743 = vmatpush.msra.mxu0 0.0
        %744 = vmatpush.msra.mxu0 0.0
        %745 = vmatpush.msra.mxu0 %v728
        %746 = vmatmul.f32.gmra.mxu0 %v726
        %v747 = vpop.f32.mrf.mxu0
        %v748 = vadd.f32 0.0, %v747
        %749 = vdwg.mxu0
        %v750 = vadd.f32 %v720, %v748
        %s751 = scalar_lea.vmem %s3, 52
        %v752 = vld [vmem:[%s751] sm:$0xf]
        %753 = vrot.lane.b32.xlu0 %v631, 117
        %v754 = vpop.permute.xlu0 %753
        %v756 = vsel %vm369, %v752, 0
        %v758 = vsel %vm373, %v754, 0
        %760 = vmatpush.msra.mxu0 0.0
        %761 = vmatpush.msra.mxu0 0.0
        %762 = vmatpush.msra.mxu0 0.0
        %763 = vmatpush.msra.mxu0 0.0
        %764 = vmatpush.msra.mxu0 0.0
        %765 = vmatpush.msra.mxu0 0.0
        %766 = vmatpush.msra.mxu0 0.0
        %767 = vmatpush.msra.mxu0 0.0
        %768 = vmatpush.msra.mxu0 0.0
        %769 = vmatpush.msra.mxu0 0.0
        %770 = vmatpush.msra.mxu0 0.0
        %771 = vmatpush.msra.mxu0 0.0
        %772 = vmatpush.msra.mxu0 0.0
        %773 = vmatpush.msra.mxu0 0.0
        %774 = vmatpush.msra.mxu0 0.0
        %775 = vmatpush.msra.mxu0 %v758
        %776 = vmatmul.f32.gmra.mxu0 %v756
        %v777 = vpop.f32.mrf.mxu0
        %v778 = vadd.f32 0.0, %v777
        %779 = vdwg.mxu0
        %v780 = vadd.f32 %v750, %v778
        %s781 = scalar_lea.vmem %s3, 56
        %v782 = vld [vmem:[%s781] sm:$0xf]
        %783 = vrot.lane.b32.xlu0 %v631, 116
        %v784 = vpop.permute.xlu0 %783
        %v786 = vsel %vm369, %v782, 0
        %v788 = vsel %vm373, %v784, 0
        %790 = vmatpush.msra.mxu0 0.0
        %791 = vmatpush.msra.mxu0 0.0
        %792 = vmatpush.msra.mxu0 0.0
        %793 = vmatpush.msra.mxu0 0.0
        %794 = vmatpush.msra.mxu0 0.0
        %795 = vmatpush.msra.mxu0 0.0
        %796 = vmatpush.msra.mxu0 0.0
        %797 = vmatpush.msra.mxu0 0.0
        %798 = vmatpush.msra.mxu0 0.0
        %799 = vmatpush.msra.mxu0 0.0
        %800 = vmatpush.msra.mxu0 0.0
        %801 = vmatpush.msra.mxu0 0.0
        %802 = vmatpush.msra.mxu0 0.0
        %803 = vmatpush.msra.mxu0 0.0
        %804 = vmatpush.msra.mxu0 0.0
        %805 = vmatpush.msra.mxu0 %v788
        %806 = vmatmul.f32.gmra.mxu0 %v786
        %v807 = vpop.f32.mrf.mxu0
        %v808 = vadd.f32 0.0, %v807
        %809 = vdwg.mxu0
        %v810 = vadd.f32 %v780, %v808
        %s811 = scalar_lea.vmem %s3, 60
        %v812 = vld [vmem:[%s811] sm:$0xf]
        %813 = vrot.lane.b32.xlu0 %v631, 108
        %v814 = vpop.permute.xlu0 %813
        %v816 = vsel %vm369, %v812, 0
        %v818 = vsel %vm373, %v814, 0
        %820 = vmatpush.msra.mxu0 0.0
        %821 = vmatpush.msra.mxu0 0.0
        %822 = vmatpush.msra.mxu0 0.0
        %823 = vmatpush.msra.mxu0 0.0
        %824 = vmatpush.msra.mxu0 0.0
        %825 = vmatpush.msra.mxu0 0.0
        %826 = vmatpush.msra.mxu0 0.0
        %827 = vmatpush.msra.mxu0 0.0
        %828 = vmatpush.msra.mxu0 0.0
        %829 = vmatpush.msra.mxu0 0.0
        %830 = vmatpush.msra.mxu0 0.0
        %831 = vmatpush.msra.mxu0 0.0
        %832 = vmatpush.msra.mxu0 0.0
        %833 = vmatpush.msra.mxu0 0.0
        %834 = vmatpush.msra.mxu0 0.0
        %835 = vmatpush.msra.mxu0 %v818
        %836 = vmatmul.f32.gmra.mxu0 %v816
        %v837 = vpop.f32.mrf.mxu0
        %v838 = vadd.f32 0.0, %v837
        %839 = vdwg.mxu0
        %v840 = vadd.f32 %v810, %v838
        %s841 = scalar_lea.vmem %s3, 64
        %v842 = vld [vmem:[%s841] sm:$0xf]
        %843 = vrot.lane.b32.xlu0 %v631, 107
        %v844 = vpop.permute.xlu0 %843
        %v846 = vsel %vm369, %v842, 0
        %v848 = vsel %vm373, %v844, 0
        %850 = vmatpush.msra.mxu0 0.0
        %851 = vmatpush.msra.mxu0 0.0
        %852 = vmatpush.msra.mxu0 0.0
        %853 = vmatpush.msra.mxu0 0.0
        %854 = vmatpush.msra.mxu0 0.0
        %855 = vmatpush.msra.mxu0 0.0
        %856 = vmatpush.msra.mxu0 0.0
        %857 = vmatpush.msra.mxu0 0.0
        %858 = vmatpush.msra.mxu0 0.0
        %859 = vmatpush.msra.mxu0 0.0
        %860 = vmatpush.msra.mxu0 0.0
        %861 = vmatpush.msra.mxu0 0.0
        %862 = vmatpush.msra.mxu0 0.0
        %863 = vmatpush.msra.mxu0 0.0
        %864 = vmatpush.msra.mxu0 0.0
        %865 = vmatpush.msra.mxu0 %v848
        %866 = vmatmul.f32.gmra.mxu0 %v846
        %v867 = vpop.f32.mrf.mxu0
        %v868 = vadd.f32 0.0, %v867
        %869 = vdwg.mxu0
        %v870 = vadd.f32 %v840, %v868
        %s871 = scalar_lea.vmem %s3, 68
        %v872 = vld [vmem:[%s871] sm:$0xf]
        %873 = vrot.lane.b32.xlu0 %v631, 106
        %v874 = vpop.permute.xlu0 %873
        %v876 = vsel %vm369, %v872, 0
        %v878 = vsel %vm373, %v874, 0
        %880 = vmatpush.msra.mxu0 0.0
        %881 = vmatpush.msra.mxu0 0.0
        %882 = vmatpush.msra.mxu0 0.0
        %883 = vmatpush.msra.mxu0 0.0
        %884 = vmatpush.msra.mxu0 0.0
        %885 = vmatpush.msra.mxu0 0.0
        %886 = vmatpush.msra.mxu0 0.0
        %887 = vmatpush.msra.mxu0 0.0
        %888 = vmatpush.msra.mxu0 0.0
        %889 = vmatpush.msra.mxu0 0.0
        %890 = vmatpush.msra.mxu0 0.0
        %891 = vmatpush.msra.mxu0 0.0
        %892 = vmatpush.msra.mxu0 0.0
        %893 = vmatpush.msra.mxu0 0.0
        %894 = vmatpush.msra.mxu0 0.0
        %895 = vmatpush.msra.mxu0 %v878
        %896 = vmatmul.f32.gmra.mxu0 %v876
        %v897 = vpop.f32.mrf.mxu0
        %v898 = vadd.f32 0.0, %v897
        %899 = vdwg.mxu0
        %v900 = vadd.f32 %v870, %v898
        %v901 = vld [vmem:[%s296] sm:$0xf]
        %s902 = scalar_lea.vmem %s3, 72
        %v903 = vld [vmem:[%s902] sm:$0xf]
        %v905 = vsel %vm369, %v903, 0
        %v908 = vsel %vm373, %v901, 0
        %910 = vmatpush.msra.mxu0 0.0
        %911 = vmatpush.msra.mxu0 0.0
        %912 = vmatpush.msra.mxu0 0.0
        %913 = vmatpush.msra.mxu0 0.0
        %914 = vmatpush.msra.mxu0 0.0
        %915 = vmatpush.msra.mxu0 0.0
        %916 = vmatpush.msra.mxu0 0.0
        %917 = vmatpush.msra.mxu0 0.0
        %918 = vmatpush.msra.mxu0 0.0
        %919 = vmatpush.msra.mxu0 0.0
        %920 = vmatpush.msra.mxu0 0.0
        %921 = vmatpush.msra.mxu0 0.0
        %922 = vmatpush.msra.mxu0 0.0
        %923 = vmatpush.msra.mxu0 0.0
        %924 = vmatpush.msra.mxu0 0.0
        %925 = vmatpush.msra.mxu0 %v908
        %926 = vmatmul.f32.gmra.mxu0 %v905
        %v927 = vpop.f32.mrf.mxu0
        %v928 = vadd.f32 0.0, %v927
        %929 = vdwg.mxu0
        %v930 = vadd.f32 %v900, %v928
        %s931 = scalar_lea.vmem %s3, 76
        %v932 = vld [vmem:[%s931] sm:$0xf]
        %933 = vrot.lane.b32.xlu0 %v901, 127
        %v934 = vpop.permute.xlu0 %933
        %v936 = vsel %vm369, %v932, 0
        %v938 = vsel %vm373, %v934, 0
        %940 = vmatpush.msra.mxu0 0.0
        %941 = vmatpush.msra.mxu0 0.0
        %942 = vmatpush.msra.mxu0 0.0
        %943 = vmatpush.msra.mxu0 0.0
        %944 = vmatpush.msra.mxu0 0.0
        %945 = vmatpush.msra.mxu0 0.0
        %946 = vmatpush.msra.mxu0 0.0
        %947 = vmatpush.msra.mxu0 0.0
        %948 = vmatpush.msra.mxu0 0.0
        %949 = vmatpush.msra.mxu0 0.0
        %950 = vmatpush.msra.mxu0 0.0
        %951 = vmatpush.msra.mxu0 0.0
        %952 = vmatpush.msra.mxu0 0.0
        %953 = vmatpush.msra.mxu0 0.0
        %954 = vmatpush.msra.mxu0 0.0
        %955 = vmatpush.msra.mxu0 %v938
        %956 = vmatmul.f32.gmra.mxu0 %v936
        %v957 = vpop.f32.mrf.mxu0
        %v958 = vadd.f32 0.0, %v957
        %959 = vdwg.mxu0
        %v960 = vadd.f32 %v930, %v958
        %s961 = scalar_lea.vmem %s3, 80
        %v962 = vld [vmem:[%s961] sm:$0xf]
        %963 = vrot.lane.b32.xlu0 %v901, 126
        %v964 = vpop.permute.xlu0 %963
        %v966 = vsel %vm369, %v962, 0
        %v968 = vsel %vm373, %v964, 0
        %970 = vmatpush.msra.mxu0 0.0
        %971 = vmatpush.msra.mxu0 0.0
        %972 = vmatpush.msra.mxu0 0.0
        %973 = vmatpush.msra.mxu0 0.0
        %974 = vmatpush.msra.mxu0 0.0
        %975 = vmatpush.msra.mxu0 0.0
        %976 = vmatpush.msra.mxu0 0.0
        %977 = vmatpush.msra.mxu0 0.0
        %978 = vmatpush.msra.mxu0 0.0
        %979 = vmatpush.msra.mxu0 0.0
        %980 = vmatpush.msra.mxu0 0.0
        %981 = vmatpush.msra.mxu0 0.0
        %982 = vmatpush.msra.mxu0 0.0
        %983 = vmatpush.msra.mxu0 0.0
        %984 = vmatpush.msra.mxu0 0.0
        %985 = vmatpush.msra.mxu0 %v968
        %986 = vmatmul.f32.gmra.mxu0 %v966
        %v987 = vpop.f32.mrf.mxu0
        %v988 = vadd.f32 0.0, %v987
        %989 = vdwg.mxu0
        %v990 = vadd.f32 %v960, %v988
        %s991 = scalar_lea.vmem %s3, 84
        %v992 = vld [vmem:[%s991] sm:$0xf]
        %993 = vrot.lane.b32.xlu0 %v901, 118
        %v994 = vpop.permute.xlu0 %993
        %v996 = vsel %vm369, %v992, 0
        %v998 = vsel %vm373, %v994, 0
        %1000 = vmatpush.msra.mxu0 0.0
        %1001 = vmatpush.msra.mxu0 0.0
        %1002 = vmatpush.msra.mxu0 0.0
        %1003 = vmatpush.msra.mxu0 0.0
        %1004 = vmatpush.msra.mxu0 0.0
        %1005 = vmatpush.msra.mxu0 0.0
        %1006 = vmatpush.msra.mxu0 0.0
        %1007 = vmatpush.msra.mxu0 0.0
        %1008 = vmatpush.msra.mxu0 0.0
        %1009 = vmatpush.msra.mxu0 0.0
        %1010 = vmatpush.msra.mxu0 0.0
        %1011 = vmatpush.msra.mxu0 0.0
        %1012 = vmatpush.msra.mxu0 0.0
        %1013 = vmatpush.msra.mxu0 0.0
        %1014 = vmatpush.msra.mxu0 0.0
        %1015 = vmatpush.msra.mxu0 %v998
        %1016 = vmatmul.f32.gmra.mxu0 %v996
        %v1017 = vpop.f32.mrf.mxu0
        %v1018 = vadd.f32 0.0, %v1017
        %1019 = vdwg.mxu0
        %v1020 = vadd.f32 %v990, %v1018
        %s1021 = scalar_lea.vmem %s3, 88
        %v1022 = vld [vmem:[%s1021] sm:$0xf]
        %1023 = vrot.lane.b32.xlu0 %v901, 117
        %v1024 = vpop.permute.xlu0 %1023
        %v1026 = vsel %vm369, %v1022, 0
        %v1028 = vsel %vm373, %v1024, 0
        %1030 = vmatpush.msra.mxu0 0.0
        %1031 = vmatpush.msra.mxu0 0.0
        %1032 = vmatpush.msra.mxu0 0.0
        %1033 = vmatpush.msra.mxu0 0.0
        %1034 = vmatpush.msra.mxu0 0.0
        %1035 = vmatpush.msra.mxu0 0.0
        %1036 = vmatpush.msra.mxu0 0.0
        %1037 = vmatpush.msra.mxu0 0.0
        %1038 = vmatpush.msra.mxu0 0.0
        %1039 = vmatpush.msra.mxu0 0.0
        %1040 = vmatpush.msra.mxu0 0.0
        %1041 = vmatpush.msra.mxu0 0.0
        %1042 = vmatpush.msra.mxu0 0.0
        %1043 = vmatpush.msra.mxu0 0.0
        %1044 = vmatpush.msra.mxu0 0.0
        %1045 = vmatpush.msra.mxu0 %v1028
        %1046 = vmatmul.f32.gmra.mxu0 %v1026
        %v1047 = vpop.f32.mrf.mxu0
        %v1048 = vadd.f32 0.0, %v1047
        %1049 = vdwg.mxu0
        %v1050 = vadd.f32 %v1020, %v1048
        %s1051 = scalar_lea.vmem %s3, 92
        %v1052 = vld [vmem:[%s1051] sm:$0xf]
        %1053 = vrot.lane.b32.xlu0 %v901, 116
        %v1054 = vpop.permute.xlu0 %1053
        %v1056 = vsel %vm369, %v1052, 0
        %v1058 = vsel %vm373, %v1054, 0
        %1060 = vmatpush.msra.mxu0 0.0
        %1061 = vmatpush.msra.mxu0 0.0
        %1062 = vmatpush.msra.mxu0 0.0
        %1063 = vmatpush.msra.mxu0 0.0
        %1064 = vmatpush.msra.mxu0 0.0
        %1065 = vmatpush.msra.mxu0 0.0
        %1066 = vmatpush.msra.mxu0 0.0
        %1067 = vmatpush.msra.mxu0 0.0
        %1068 = vmatpush.msra.mxu0 0.0
        %1069 = vmatpush.msra.mxu0 0.0
        %1070 = vmatpush.msra.mxu0 0.0
        %1071 = vmatpush.msra.mxu0 0.0
        %1072 = vmatpush.msra.mxu0 0.0
        %1073 = vmatpush.msra.mxu0 0.0
        %1074 = vmatpush.msra.mxu0 0.0
        %1075 = vmatpush.msra.mxu0 %v1058
        %1076 = vmatmul.f32.gmra.mxu0 %v1056
        %v1077 = vpop.f32.mrf.mxu0
        %v1078 = vadd.f32 0.0, %v1077
        %1079 = vdwg.mxu0
        %v1080 = vadd.f32 %v1050, %v1078
        %s1081 = scalar_lea.vmem %s3, 96
        %v1082 = vld [vmem:[%s1081] sm:$0xf]
        %1083 = vrot.lane.b32.xlu0 %v901, 108
        %v1084 = vpop.permute.xlu0 %1083
        %v1086 = vsel %vm369, %v1082, 0
        %v1088 = vsel %vm373, %v1084, 0
        %1090 = vmatpush.msra.mxu0 0.0
        %1091 = vmatpush.msra.mxu0 0.0
        %1092 = vmatpush.msra.mxu0 0.0
        %1093 = vmatpush.msra.mxu0 0.0
        %1094 = vmatpush.msra.mxu0 0.0
        %1095 = vmatpush.msra.mxu0 0.0
        %1096 = vmatpush.msra.mxu0 0.0
        %1097 = vmatpush.msra.mxu0 0.0
        %1098 = vmatpush.msra.mxu0 0.0
        %1099 = vmatpush.msra.mxu0 0.0
        %1100 = vmatpush.msra.mxu0 0.0
        %1101 = vmatpush.msra.mxu0 0.0
        %1102 = vmatpush.msra.mxu0 0.0
        %1103 = vmatpush.msra.mxu0 0.0
        %1104 = vmatpush.msra.mxu0 0.0
        %1105 = vmatpush.msra.mxu0 %v1088
        %1106 = vmatmul.f32.gmra.mxu0 %v1086
        %v1107 = vpop.f32.mrf.mxu0
        %v1108 = vadd.f32 0.0, %v1107
        %1109 = vdwg.mxu0
        %v1110 = vadd.f32 %v1080, %v1108
        %s1111 = scalar_lea.vmem %s3, 100
        %v1112 = vld [vmem:[%s1111] sm:$0xf]
        %1113 = vrot.lane.b32.xlu0 %v901, 107
        %v1114 = vpop.permute.xlu0 %1113
        %v1116 = vsel %vm369, %v1112, 0
        %v1118 = vsel %vm373, %v1114, 0
        %1120 = vmatpush.msra.mxu0 0.0
        %1121 = vmatpush.msra.mxu0 0.0
        %1122 = vmatpush.msra.mxu0 0.0
        %1123 = vmatpush.msra.mxu0 0.0
        %1124 = vmatpush.msra.mxu0 0.0
        %1125 = vmatpush.msra.mxu0 0.0
        %1126 = vmatpush.msra.mxu0 0.0
        %1127 = vmatpush.msra.mxu0 0.0
        %1128 = vmatpush.msra.mxu0 0.0
        %1129 = vmatpush.msra.mxu0 0.0
        %1130 = vmatpush.msra.mxu0 0.0
        %1131 = vmatpush.msra.mxu0 0.0
        %1132 = vmatpush.msra.mxu0 0.0
        %1133 = vmatpush.msra.mxu0 0.0
        %1134 = vmatpush.msra.mxu0 0.0
        %1135 = vmatpush.msra.mxu0 %v1118
        %1136 = vmatmul.f32.gmra.mxu0 %v1116
        %v1137 = vpop.f32.mrf.mxu0
        %v1138 = vadd.f32 0.0, %v1137
        %1139 = vdwg.mxu0
        %v1140 = vadd.f32 %v1110, %v1138
        %s1141 = scalar_lea.vmem %s3, 104
        %v1142 = vld [vmem:[%s1141] sm:$0xf]
        %1143 = vrot.lane.b32.xlu0 %v901, 106
        %v1144 = vpop.permute.xlu0 %1143
        %v1146 = vsel %vm369, %v1142, 0
        %v1148 = vsel %vm373, %v1144, 0
        %1150 = vmatpush.msra.mxu0 0.0
        %1151 = vmatpush.msra.mxu0 0.0
        %1152 = vmatpush.msra.mxu0 0.0
        %1153 = vmatpush.msra.mxu0 0.0
        %1154 = vmatpush.msra.mxu0 0.0
        %1155 = vmatpush.msra.mxu0 0.0
        %1156 = vmatpush.msra.mxu0 0.0
        %1157 = vmatpush.msra.mxu0 0.0
        %1158 = vmatpush.msra.mxu0 0.0
        %1159 = vmatpush.msra.mxu0 0.0
        %1160 = vmatpush.msra.mxu0 0.0
        %1161 = vmatpush.msra.mxu0 0.0
        %1162 = vmatpush.msra.mxu0 0.0
        %1163 = vmatpush.msra.mxu0 0.0
        %1164 = vmatpush.msra.mxu0 0.0
        %1165 = vmatpush.msra.mxu0 %v1148
        %1166 = vmatmul.f32.gmra.mxu0 %v1146
        %v1167 = vpop.f32.mrf.mxu0
        %v1168 = vadd.f32 0.0, %v1167
        %1169 = vdwg.mxu0
        %v1170 = vadd.f32 %v1140, %v1168
        %v1171 = vld [vmem:[%s4] sm:$0xf]
        %1173 = vset.pattern.permute.xlu0 0
        %1174 = vperm.xlu0 %1173, %v1171
        %v1175 = vpop.permute.xlu0 %1174
        %v1177 = vadd.f32 %v1170, %v1175
        %v1178 = vld [vmem:[#allocation2] sm:$0x1]
        %vm1179 = vcmp.ge.f32.partialorder %v1177, 0.0
        %v1181 = vperm.slane %v1178, 0
        %1182 = vset.pattern.permute.xlu0 0
        %1183 = vperm.xlu0 %1182, %v1181
        %v1184 = vpop.permute.xlu0 %1183
        %v1186 = vmul.f32 %v1177, %v1184
        %v1187 = vsel %vm1179, %v1177, %v1186
        %vm1188 = vcmask 650240
        %1189 = vst.msk [vmem:[%s342] sm:$0xf] %vm1188, %v1187
        %s1190 = sand.u32 %s198, 1
        %s1191 = scalar_lea.sflag [#allocation5], %s1190
        %s1192 = sand.u32 %s198, 1
        %s1193 = smul.addr %s1192, 4
        %s1194 = scalar_lea.vmem [#allocation6], %s1193
        // Predicated region
        $region49: #{tpu_custom_call.1} parent=43 // pred_check
          %p1195 = pneg %p208
        $region50: #{tpu_custom_call.1} parent=43 // pred_check_branch
          %1197 = sbr.rel (%p1195) target = $region52
        $region51: #{tpu_custom_call.1} parent=43 // pred_region
          %1199 = vsyncadd %s1191, 0
          %s1200 = smul.addr %s29, 4
          %s1201 = sadd.s32 %s30, %s1200
          %s1202 = smul.addr %s1201, 4
          %s1203 = scalar_lea.hbm %s6, %s1202
          %s1205 = sshll.u32 %s1194, 4
          %s1206 = int_to_ptr.vmem [resolvable:$true] %s1205
          %s1207 = sshll.u32 %s1203, 4
          %s1208 = int_to_ptr.hbm [resolvable:$true] %s1207
          %1210 = dma.vmem_to_hbm [thread:$0]  %s1206, 64, %s1208, %s1191
        $region52: #{tpu_custom_call.1} parent=43 // pred_fallthru
          _
      $region44: #{tpu_custom_call.1} parent=5 // pred_fallthru
        _
      %p1211 = scmp.le.s32.totalorder 2, %s20
      // Predicated region
      $region53: #{tpu_custom_call.1} parent=5 // pred_check
        %p1212 = pneg %p1211
      $region54: #{tpu_custom_call.1} parent=5 // pred_check_branch
        %1214 = sbr.rel (%p1212) target = $region56
      $region55: #{tpu_custom_call.1} parent=5 // pred_region
        %s1215 = ssub.s32 %s20, 2
        // Predicated region
        $region57: #{tpu_custom_call.1} parent=55 // pred_check
          %p1216 = pneg %p214
        $region58: #{tpu_custom_call.1} parent=55 // pred_check_branch
          %1218 = sbr.rel (%p1216) target = $region60
        $region59: #{tpu_custom_call.1} parent=55 // pred_region
          %s1219 = sand.u32 %s199, 1
          %s1220 = scalar_lea.sflag [#allocation5], %s1219
          %s1221 = sand.u32 %s199, 1
          %s1222 = smul.addr %s1221, 4
          %s1223 = scalar_lea.vmem [#allocation6], %s1222
          %1225 = dma.done %s1220, 64
        $region60: #{tpu_custom_call.1} parent=55 // pred_fallthru
          _
      $region56: #{tpu_custom_call.1} parent=5 // pred_fallthru
        _
    $region6: #{tpu_custom_call.1} parent=1 // loop_footer
      %s24 = sadd.s32 1, %s20
    $region7: #{tpu_custom_call.1} parent=1 // loop_footer_branch
      %19 = sbr.rel target = $region3
    $region8: #{tpu_custom_call.1} parent=1 // loop_exit
      _
    %1226 = vsyncpa [#allocation4], 1
    %s1227 = scalar_lea.sflag [#allocation4], 1
    %1228 = vsyncpa %s1227, 1
    %1229 = vsyncpa [#allocation5], 1
    %s1230 = scalar_lea.sflag [#allocation5], 1
    %1231 = vsyncpa %s1230, 1

</llo_original>
